<compile_context>
chip_gen: v5e
topology: v5e:2x2
jax: 0.10.0
libtpu: 0.0.40
codegen_flags: <defaults>
</compile_context>

<pallas_src>
import jax
import jax.numpy as jnp
from jax.experimental import pallas as pl
from jax.experimental.pallas import tpu as pltpu

# ---- sizes consistent with the module ----
VOCAB = 20            # vocabulary_size (amino acids)
NUM_FEATS = 8         # num_feats (aa_feats columns after min-max scaling)
EMB_SIZE = 32         # emb_size
WIN_SIZE = 4          # win_size  -> sequence length = 2 * win_size
HIDDEN = 512          # hidden_size
SEQ = 2 * WIN_SIZE
INP_SIZE = EMB_SIZE + NUM_FEATS
D_IN = SEQ * INP_SIZE        # 320
D_IN_PAD = 384               # 3 * 128 lanes (zero-padded, exact)
VOCAB_PAD = 128              # lane-dense final matmul / softmax / store
EPS = 1e-5
NEG_INF = -1e30
TILE_B_MAX = 256


def _round_up(x, m):
    return ((x + m - 1) // m) * m


def mlp_kernel(x_ref,
               w1_ref, b1_ref,
               w2_ref, b2_ref,
               w3_ref, b3_ref,
               wf_ref, bf_ref,
               o_ref):
    """One batch tile of the MLP: 4 MXU matmuls + fused bias/ReLU/softmax.

    BatchNorm (eval-mode) is already folded into (w, b) by the wrapper.
    Matmuls take bf16 inputs with fp32 accumulation; all elementwise math is
    fp32 (v5e has no bf16 VPU/EUP path), casting back to bf16 only to feed the
    next MXU matmul.
    """

    def layer(h_bf16, w_ref, b_ref):
        y = jnp.dot(h_bf16, w_ref[...],
                    preferred_element_type=jnp.float32) + b_ref[...]
        return jnp.maximum(y, 0.0).astype(jnp.bfloat16)

    h = layer(x_ref[...], w1_ref, b1_ref)
    h = layer(h, w2_ref, b2_ref)
    h = layer(h, w3_ref, b3_ref)

    # Final linear into 128 padded vocab lanes; padded columns carry bias
    # -1e30 so they vanish from the softmax (exp underflows to exactly 0).
    logits = jnp.dot(h, wf_ref[...],
                     preferred_element_type=jnp.float32) + bf_ref[...]
    m = jnp.max(logits, axis=-1, keepdims=True)
    e = jnp.exp(logits - m)
    denom = jnp.sum(e, axis=-1, keepdims=True)
    o_ref[...] = e * pl.reciprocal(denom, approx=False)


def init_params(key):
    """PyTorch-style fp32 parameters (Linear + BatchNorm running stats)."""
    ks = jax.random.split(key, 18)
    p = {}
    # emb1: frozen min-max-scaled aa_feats -> values in [0, 1]
    p["emb1_w"] = jax.random.uniform(ks[0], (VOCAB, NUM_FEATS), jnp.float32)
    # emb2: learned embedding
    p["emb2_w"] = jax.random.normal(ks[1], (VOCAB, EMB_SIZE), jnp.float32)

    def linear(k, fan_in, fan_out):
        kw, kb = jax.random.split(k)
        bound = 1.0 / jnp.sqrt(fan_in)
        w = jax.random.uniform(kw, (fan_in, fan_out), jnp.float32, -bound, bound)
        b = jax.random.uniform(kb, (1, fan_out), jnp.float32, -bound, bound)
        return w, b

    p["w1"], p["b1"] = linear(ks[2], D_IN, HIDDEN)
    p["w2"], p["b2"] = linear(ks[3], HIDDEN, HIDDEN // 2)
    p["w3"], p["b3"] = linear(ks[4], HIDDEN // 2, HIDDEN)
    p["wf"], p["bf"] = linear(ks[5], HIDDEN, VOCAB)

    def bn(kg, kb, km, kv, n):
        g = 1.0 + 0.1 * jax.random.normal(kg, (1, n), jnp.float32)
        be = 0.1 * jax.random.normal(kb, (1, n), jnp.float32)
        mean = 0.1 * jax.random.normal(km, (1, n), jnp.float32)
        var = 0.5 + jax.random.uniform(kv, (1, n), jnp.float32)  # > 0
        return g, be, mean, var

    p["g1"], p["be1"], p["m1"], p["v1"] = bn(ks[6], ks[7], ks[8], ks[9], HIDDEN)
    p["g2"], p["be2"], p["m2"], p["v2"] = bn(ks[10], ks[11], ks[12], ks[13], HIDDEN // 2)
    p["g3"], p["be3"], p["m3"], p["v3"] = bn(ks[14], ks[15], ks[16], ks[17], HIDDEN)
    return p


def prepare_params(p):
    """Fold eval-mode BN into each Linear, pad to lane multiples, cast to bf16."""

    def fold(w, b, g, be, mean, var):
        # y = g * (x@w + b - mean) / sqrt(var+eps) + be
        #   = x @ (w*scale) + ((b - mean)*scale + be)
        scale = g / jnp.sqrt(var + EPS)
        w_f = (w * scale).astype(jnp.bfloat16)
        b_f = ((b - mean) * scale + be).astype(jnp.float32)
        return w_f, b_f

    w1, b1 = fold(p["w1"], p["b1"], p["g1"], p["be1"], p["m1"], p["v1"])
    w2, b2 = fold(p["w2"], p["b2"], p["g2"], p["be2"], p["m2"], p["v2"])
    w3, b3 = fold(p["w3"], p["b3"], p["g3"], p["be3"], p["m3"], p["v3"])

    # Pad K of the first matmul 320 -> 384 with zero rows (exact: 0-cols of x
    # hit 0-rows of w1).
    w1 = jnp.pad(w1, ((0, D_IN_PAD - D_IN), (0, 0)))

    # Pad vocab 20 -> 128: zero weight columns, -1e30 bias so the softmax
    # denominator is untouched (exp underflows to 0 in the padded lanes).
    wf = jnp.pad(p["wf"].astype(jnp.bfloat16), ((0, 0), (0, VOCAB_PAD - VOCAB)))
    bf = jnp.pad(p["bf"].astype(jnp.float32), ((0, 0), (0, VOCAB_PAD - VOCAB)),
                 constant_values=NEG_INF)

    # Concatenated embedding table (matches torch.cat((emb1, emb2), 2) layout).
    emb = jnp.concatenate([p["emb1_w"], p["emb2_w"]], axis=1)  # (VOCAB, INP_SIZE)

    return dict(emb=emb, w1=w1, b1=b1, w2=w2, b2=b2, w3=w3, b3=b3, wf=wf, bf=bf)


def mlp_forward(x_tokens, prep):
    """x_tokens: (B, 2*win_size) int32 token ids; prep: prepare_params(...)."""
    B = x_tokens.shape[0]

    # Batch tiling: up to 256 rows per tile (fits VMEM with huge margin even on
    # v7x's 64 MiB); small batches round up to a multiple of 16 (bf16 sublane).
    tile_b = min(TILE_B_MAX, _round_up(B, 16))
    b_pad = _round_up(B, tile_b)
    grid = (b_pad // tile_b,)

    # Glue: embedding gather + flatten (emb.unsqueeze(1).view(B, -1)), then pad
    # batch -> b_pad rows and features 320 -> 384 lanes.  bf16 halves the
    # HBM->VMEM DMA bytes for the activations.
    emb = jnp.take(prep["emb"], x_tokens, axis=0)            # (B, SEQ, INP_SIZE)
    x_flat = emb.reshape(B, D_IN).astype(jnp.bfloat16)
    x_flat = jnp.pad(x_flat, ((0, b_pad - B), (0, D_IN_PAD - D_IN)))

    # Weights/biases: constant index_map -> fetched once, VMEM-resident across
    # the batch grid.
    def resident(shape):
        return pl.BlockSpec(shape, lambda i: (0, 0))

    flops = 2 * b_pad * (D_IN_PAD * HIDDEN + HIDDEN * (HIDDEN // 2)
                         + (HIDDEN // 2) * HIDDEN + HIDDEN * VOCAB_PAD)
    bytes_accessed = (x_flat.size * 2 + b_pad * VOCAB_PAD * 4
                      + sum(prep[k].size * 2 for k in ("w1", "w2", "w3", "wf"))
                      + sum(prep[k].size * 4 for k in ("b1", "b2", "b3", "bf")))

    out = pl.pallas_call(
        mlp_kernel,
        out_shape=jax.ShapeDtypeStruct((b_pad, VOCAB_PAD), jnp.float32),
        grid=grid,
        in_specs=[
            pl.BlockSpec((tile_b, D_IN_PAD), lambda i: (i, 0)),   # x tile
            resident((D_IN_PAD, HIDDEN)), resident((1, HIDDEN)),          # layer1
            resident((HIDDEN, HIDDEN // 2)), resident((1, HIDDEN // 2)),  # layer2
            resident((HIDDEN // 2, HIDDEN)), resident((1, HIDDEN)),       # layer3
            resident((HIDDEN, VOCAB_PAD)), resident((1, VOCAB_PAD)),      # fc
        ],
        out_specs=pl.BlockSpec((tile_b, VOCAB_PAD), lambda i: (i, 0)),
        compiler_params=pltpu.CompilerParams(
            dimension_semantics=("parallel",)),   # v7x: 2 TCs split batch tiles
        cost_estimate=pl.CostEstimate(
            flops=flops,
            transcendentals=b_pad * VOCAB_PAD,
            bytes_accessed=bytes_accessed),
    )(x_flat,
      prep["w1"], prep["b1"],
      prep["w2"], prep["b2"],
      prep["w3"], prep["b3"],
      prep["wf"], prep["bf"])

    # Strip batch padding and the padded vocab lanes.
    return out[:B, :VOCAB]


def mlp_reference(x_tokens, p):
    """Pure-JAX fp32 reference of the original forward (eval-mode BN)."""
    B = x_tokens.shape[0]
    e1 = jnp.take(p["emb1_w"], x_tokens, axis=0)
    e2 = jnp.take(p["emb2_w"], x_tokens, axis=0)
    h = jnp.concatenate([e1, e2], axis=2).reshape(B, D_IN).astype(jnp.float32)

    def lbr(h, w, b, g, be, mean, var):
        h = h @ w + b
        h = g * (h - mean) / jnp.sqrt(var + EPS) + be
        return jnp.maximum(h, 0.0)

    h = lbr(h, p["w1"], p["b1"], p["g1"], p["be1"], p["m1"], p["v1"])
    h = lbr(h, p["w2"], p["b2"], p["g2"], p["be2"], p["m2"], p["v2"])
    h = lbr(h, p["w3"], p["b3"], p["g3"], p["be3"], p["m3"], p["v3"])
    logits = h @ p["wf"] + p["bf"]
    return jax.nn.softmax(logits, axis=-1)


if __name__ == "__main__":
    key = jax.random.PRNGKey(0)
    kp, kx = jax.random.split(key)
    params = init_params(kp)
    prep = prepare_params(params)

    B = 2
    x_tokens = jax.random.randint(kx, (B, SEQ), 0, VOCAB, dtype=jnp.int32)

    out = jax.jit(mlp_forward)(x_tokens, prep)
    out = jax.block_until_ready(out)

    ref = mlp_reference(x_tokens, params)
    assert out.shape == (B, VOCAB)
    # Softmax rows must sum to 1 (padded lanes contribute exactly 0).
    assert jnp.allclose(jnp.sum(out, axis=-1), 1.0, atol=1e-3)
    # bf16 weights vs fp32 reference -> loose-but-meaningful tolerance.
    max_err = float(jnp.max(jnp.abs(out - ref)))
    assert max_err < 2e-2, f"max abs err {max_err}"

    print("KERNEL_OK")
</pallas_src>

<mosaic_0001>
module attributes {stable_mosaic.version = 11 : i64} {
  func.func @mlp_kernel(%arg0: i32, %arg1: memref<16x384xbf16, #tpu.memory_space<vmem>>, %arg2: memref<384x512xbf16, #tpu.memory_space<vmem>>, %arg3: memref<1x512xf32, #tpu.memory_space<vmem>>, %arg4: memref<512x256xbf16, #tpu.memory_space<vmem>>, %arg5: memref<1x256xf32, #tpu.memory_space<vmem>>, %arg6: memref<256x512xbf16, #tpu.memory_space<vmem>>, %arg7: memref<1x512xf32, #tpu.memory_space<vmem>>, %arg8: memref<512x128xbf16, #tpu.memory_space<vmem>>, %arg9: memref<1x128xf32, #tpu.memory_space<vmem>>, %arg10: memref<16x128xf32, #tpu.memory_space<vmem>>) attributes {dimension_semantics = [#tpu.dimension_semantics<parallel>], iteration_bounds = array<i64: 1>, scalar_prefetch = 0 : i64, scratch_operands = 0 : i64, tpu.core_type = #tpu.core_type<tc>, window_params = [{transform_indices = @transform_0, window_bounds = array<i64: 16, 384>}, {pipeline_mode = #tpu.pipeline_mode<synchronous>, transform_indices = @transform_1, window_bounds = array<i64: 384, 512>}, {pipeline_mode = #tpu.pipeline_mode<synchronous>, transform_indices = @transform_2, window_bounds = array<i64: 1, 512>}, {pipeline_mode = #tpu.pipeline_mode<synchronous>, transform_indices = @transform_3, window_bounds = array<i64: 512, 256>}, {pipeline_mode = #tpu.pipeline_mode<synchronous>, transform_indices = @transform_4, window_bounds = array<i64: 1, 256>}, {pipeline_mode = #tpu.pipeline_mode<synchronous>, transform_indices = @transform_5, window_bounds = array<i64: 256, 512>}, {pipeline_mode = #tpu.pipeline_mode<synchronous>, transform_indices = @transform_6, window_bounds = array<i64: 1, 512>}, {pipeline_mode = #tpu.pipeline_mode<synchronous>, transform_indices = @transform_7, window_bounds = array<i64: 512, 128>}, {pipeline_mode = #tpu.pipeline_mode<synchronous>, transform_indices = @transform_8, window_bounds = array<i64: 1, 128>}, {transform_indices = @transform_9, window_bounds = array<i64: 16, 128>}]} {
    %c0 = arith.constant 0 : index
    %c0_0 = arith.constant 0 : index
    %0 = vector.load %arg1[%c0, %c0_0] : memref<16x384xbf16, #tpu.memory_space<vmem>>, vector<16x384xbf16>
    %c0_1 = arith.constant 0 : index
    %c0_2 = arith.constant 0 : index
    %1 = vector.load %arg2[%c0_1, %c0_2] : memref<384x512xbf16, #tpu.memory_space<vmem>>, vector<384x512xbf16>
    %cst = arith.constant dense<0.000000e+00> : vector<16x512xf32>
    %2 = tpu.matmul %0, %1, %cst {dimension_numbers = #tpu.dot_dimension_numbers<[1], [0], [0], [1], [0, 0, 1, 1], [], []>} : vector<16x384xbf16>, vector<384x512xbf16>, vector<16x512xf32> -> vector<16x512xf32>
    %c0_3 = arith.constant 0 : index
    %c0_4 = arith.constant 0 : index
    %3 = vector.load %arg3[%c0_3, %c0_4] : memref<1x512xf32, #tpu.memory_space<vmem>>, vector<1x512xf32>
    %4 = vector.broadcast %3 : vector<1x512xf32> to vector<16x512xf32>
    %5 = arith.addf %2, %4 : vector<16x512xf32>
    %cst_5 = arith.constant 0.000000e+00 : f32
    %6 = vector.broadcast %cst_5 : f32 to vector<16x512xf32>
    %7 = arith.maximumf %5, %6 : vector<16x512xf32>
    %8 = arith.truncf %7 : vector<16x512xf32> to vector<16x512xbf16>
    %c0_6 = arith.constant 0 : index
    %c0_7 = arith.constant 0 : index
    %9 = vector.load %arg4[%c0_6, %c0_7] : memref<512x256xbf16, #tpu.memory_space<vmem>>, vector<512x256xbf16>
    %cst_8 = arith.constant dense<0.000000e+00> : vector<16x256xf32>
    %10 = tpu.matmul %8, %9, %cst_8 {dimension_numbers = #tpu.dot_dimension_numbers<[1], [0], [0], [1], [0, 0, 1, 1], [], []>} : vector<16x512xbf16>, vector<512x256xbf16>, vector<16x256xf32> -> vector<16x256xf32>
    %c0_9 = arith.constant 0 : index
    %c0_10 = arith.constant 0 : index
    %11 = vector.load %arg5[%c0_9, %c0_10] : memref<1x256xf32, #tpu.memory_space<vmem>>, vector<1x256xf32>
    %12 = vector.broadcast %11 : vector<1x256xf32> to vector<16x256xf32>
    %13 = arith.addf %10, %12 : vector<16x256xf32>
    %cst_11 = arith.constant 0.000000e+00 : f32
    %14 = vector.broadcast %cst_11 : f32 to vector<16x256xf32>
    %15 = arith.maximumf %13, %14 : vector<16x256xf32>
    %16 = arith.truncf %15 : vector<16x256xf32> to vector<16x256xbf16>
    %c0_12 = arith.constant 0 : index
    %c0_13 = arith.constant 0 : index
    %17 = vector.load %arg6[%c0_12, %c0_13] : memref<256x512xbf16, #tpu.memory_space<vmem>>, vector<256x512xbf16>
    %cst_14 = arith.constant dense<0.000000e+00> : vector<16x512xf32>
    %18 = tpu.matmul %16, %17, %cst_14 {dimension_numbers = #tpu.dot_dimension_numbers<[1], [0], [0], [1], [0, 0, 1, 1], [], []>} : vector<16x256xbf16>, vector<256x512xbf16>, vector<16x512xf32> -> vector<16x512xf32>
    %c0_15 = arith.constant 0 : index
    %c0_16 = arith.constant 0 : index
    %19 = vector.load %arg7[%c0_15, %c0_16] : memref<1x512xf32, #tpu.memory_space<vmem>>, vector<1x512xf32>
    %20 = vector.broadcast %19 : vector<1x512xf32> to vector<16x512xf32>
    %21 = arith.addf %18, %20 : vector<16x512xf32>
    %cst_17 = arith.constant 0.000000e+00 : f32
    %22 = vector.broadcast %cst_17 : f32 to vector<16x512xf32>
    %23 = arith.maximumf %21, %22 : vector<16x512xf32>
    %24 = arith.truncf %23 : vector<16x512xf32> to vector<16x512xbf16>
    %c0_18 = arith.constant 0 : index
    %c0_19 = arith.constant 0 : index
    %25 = vector.load %arg8[%c0_18, %c0_19] : memref<512x128xbf16, #tpu.memory_space<vmem>>, vector<512x128xbf16>
    %cst_20 = arith.constant dense<0.000000e+00> : vector<16x128xf32>
    %26 = tpu.matmul %24, %25, %cst_20 {dimension_numbers = #tpu.dot_dimension_numbers<[1], [0], [0], [1], [0, 0, 1, 1], [], []>} : vector<16x512xbf16>, vector<512x128xbf16>, vector<16x128xf32> -> vector<16x128xf32>
    %c0_21 = arith.constant 0 : index
    %c0_22 = arith.constant 0 : index
    %27 = vector.load %arg9[%c0_21, %c0_22] : memref<1x128xf32, #tpu.memory_space<vmem>>, vector<1x128xf32>
    %28 = vector.broadcast %27 : vector<1x128xf32> to vector<16x128xf32>
    %29 = arith.addf %26, %28 : vector<16x128xf32>
    %cst_23 = arith.constant dense<0xFF800000> : vector<16xf32>
    %30 = vector.multi_reduction <maximumf>, %29, %cst_23 [1] : vector<16x128xf32> to vector<16xf32>
    %31 = vector.shape_cast %30 : vector<16xf32> to vector<16x1xf32>
    %32 = vector.broadcast %31 : vector<16x1xf32> to vector<16x128xf32>
    %33 = arith.subf %29, %32 : vector<16x128xf32>
    %34 = math.exp %33 : vector<16x128xf32>
    %cst_24 = arith.constant dense<0.000000e+00> : vector<16xf32>
    %35 = vector.multi_reduction <add>, %34, %cst_24 [1] : vector<16x128xf32> to vector<16xf32>
    %36 = vector.shape_cast %35 : vector<16xf32> to vector<16x1xf32>
    %37 = tpu.reciprocal %36 : vector<16x1xf32> -> vector<16x1xf32>
    %38 = vector.broadcast %37 : vector<16x1xf32> to vector<16x128xf32>
    %39 = arith.mulf %34, %38 : vector<16x128xf32>
    %c0_25 = arith.constant 0 : index
    %c0_26 = arith.constant 0 : index
    %40 = vector.load %arg10[%c0_25, %c0_26] : memref<16x128xf32, #tpu.memory_space<vmem>>, vector<16x128xf32>
    tpu.vector_store %arg10[%c0_25, %c0_26], %39 {strides = array<i32>} : memref<16x128xf32, #tpu.memory_space<vmem>>, vector<16x128xf32>,
    return
  }
  func.func @transform_0(%arg0: i32) -> (i32, i32) {
    %c0_i32 = arith.constant 0 : i32
    %c0_i32_0 = arith.constant 0 : i32
    return %arg0, %c0_i32 : i32, i32
  }
  func.func @transform_1(%arg0: i32) -> (i32, i32) {
    %c0_i32 = arith.constant 0 : i32
    %c0_i32_0 = arith.constant 0 : i32
    %c0_i32_1 = arith.constant 0 : i32
    return %c0_i32, %c0_i32_0 : i32, i32
  }
  func.func @transform_2(%arg0: i32) -> (i32, i32) {
    %c0_i32 = arith.constant 0 : i32
    %c0_i32_0 = arith.constant 0 : i32
    %c0_i32_1 = arith.constant 0 : i32
    return %c0_i32, %c0_i32_0 : i32, i32
  }
  func.func @transform_3(%arg0: i32) -> (i32, i32) {
    %c0_i32 = arith.constant 0 : i32
    %c0_i32_0 = arith.constant 0 : i32
    %c0_i32_1 = arith.constant 0 : i32
    return %c0_i32, %c0_i32_0 : i32, i32
  }
  func.func @transform_4(%arg0: i32) -> (i32, i32) {
    %c0_i32 = arith.constant 0 : i32
    %c0_i32_0 = arith.constant 0 : i32
    %c0_i32_1 = arith.constant 0 : i32
    return %c0_i32, %c0_i32_0 : i32, i32
  }
  func.func @transform_5(%arg0: i32) -> (i32, i32) {
    %c0_i32 = arith.constant 0 : i32
    %c0_i32_0 = arith.constant 0 : i32
    %c0_i32_1 = arith.constant 0 : i32
    return %c0_i32, %c0_i32_0 : i32, i32
  }
  func.func @transform_6(%arg0: i32) -> (i32, i32) {
    %c0_i32 = arith.constant 0 : i32
    %c0_i32_0 = arith.constant 0 : i32
    %c0_i32_1 = arith.constant 0 : i32
    return %c0_i32, %c0_i32_0 : i32, i32
  }
  func.func @transform_7(%arg0: i32) -> (i32, i32) {
    %c0_i32 = arith.constant 0 : i32
    %c0_i32_0 = arith.constant 0 : i32
    %c0_i32_1 = arith.constant 0 : i32
    return %c0_i32, %c0_i32_0 : i32, i32
  }
  func.func @transform_8(%arg0: i32) -> (i32, i32) {
    %c0_i32 = arith.constant 0 : i32
    %c0_i32_0 = arith.constant 0 : i32
    %c0_i32_1 = arith.constant 0 : i32
    return %c0_i32, %c0_i32_0 : i32, i32
  }
  func.func @transform_9(%arg0: i32) -> (i32, i32) {
    %c0_i32 = arith.constant 0 : i32
    %c0_i32_0 = arith.constant 0 : i32
    return %arg0, %c0_i32 : i32, i32
  }
}

</mosaic_0001>

<llo_original>
// kernel: mlp_forward.1
$region0: #{mlp_forward.1}
  #allocation0 [shape = 'u32[]', space=smem, size = 0x4, offset = 0x4, fixed_abs, tag = 'smem constant byte address 0x4 - core index']
  #allocation1 [shape = 'u32[72,128]{1,0:T(1,128)}', space=vmem, size = 0x9000, scoped, tag = 'internal scratch']
  %s0 = inlined_call_operand.vmem [shape: bf16[16,384], index: 0, kind: input, shape index: {}]
  %s1 = inlined_call_operand.hbm [shape: bf16[384,512], index: 1, kind: input, shape index: {}]
  %s2 = inlined_call_operand.vmem [shape: f32[1,512], index: 2, kind: input, shape index: {}]
  %s3 = inlined_call_operand.hbm [shape: bf16[512,256], index: 3, kind: input, shape index: {}]
  %s4 = inlined_call_operand.vmem [shape: f32[1,256], index: 4, kind: input, shape index: {}]
  %s5 = inlined_call_operand.hbm [shape: bf16[256,512], index: 5, kind: input, shape index: {}]
  %s6 = inlined_call_operand.vmem [shape: f32[1,512], index: 6, kind: input, shape index: {}]
  %s7 = inlined_call_operand.hbm [shape: bf16[512,128], index: 7, kind: input, shape index: {}]
  %s8 = inlined_call_operand.vmem [shape: f32[1,128], index: 8, kind: input, shape index: {}]
  %s9 = inlined_call_operand.vmem [shape: f32[16,128], index: 9, kind: output, shape index: {}]
  %s10 = sld [smem:[#allocation0]]
  $region62: #{mlp_forward.1} parent=0
    _
  %s12 = ssub.s32 1, %s10
  %s13 = scalar_select 0, %s12, %s10
  $region1: #{mlp_forward.1} parent=0
    #allocation2 [shape = 'u8[393216]{0}', space=vmem, size = 0x60000, scoped, tag = 'input window, operand 1, single buffered']
    #allocation3 [shape = 's32[1]{0}', space=sflag, size = 0x4, scoped, tag = 'scoped memory for mlp_forward.1']
    #allocation4 [shape = 'u8[262144]{0}', space=vmem, size = 0x40000, scoped, tag = 'input window, operand 3, single buffered']
    #allocation5 [shape = 's32[1]{0}', space=sflag, size = 0x4, scoped, tag = 'scoped memory for mlp_forward.1']
    #allocation6 [shape = 'u8[262144]{0}', space=vmem, size = 0x40000, scoped, tag = 'input window, operand 5, single buffered']
    #allocation7 [shape = 'u8[131072]{0}', space=vmem, size = 0x20000, scoped, tag = 'input window, operand 7, single buffered']
    #allocation8 [shape = 's32[1]{0}', space=sflag, size = 0x4, scoped, tag = 'scoped memory for mlp_forward.1']
    %14 = vsyncpa [#allocation3], 0
    %15 = vsyncpa [#allocation5], 0
    %16 = vsyncpa [#allocation8], 0
    // Predicated region
    $region2: #{mlp_forward.1} parent=1 // pred_check
      _
    $region3: #{mlp_forward.1} parent=1 // pred_check_branch
      %18 = sbr.rel (0) target = $region5
    $region4: #{mlp_forward.1} parent=1 // pred_region
      _
    $region5: #{mlp_forward.1} parent=1 // pred_fallthru
      _
    // Predicated region
    $region6: #{mlp_forward.1} parent=1 // pred_check
      _
    $region7: #{mlp_forward.1} parent=1 // pred_check_branch
      %20 = sbr.rel (0) target = $region9
    $region8: #{mlp_forward.1} parent=1 // pred_region
      %22 = vsyncadd [#allocation3], 0
      %s23 = sshll.u32 %s1, 4
      %s24 = int_to_ptr.hbm [resolvable:$true] %s23
      %s25 = sshll.u32 [#allocation2], 4
      %s26 = int_to_ptr.vmem [resolvable:$true] %s25
      %31 = dma.hbm_to_vmem [thread:$0]  %s24, 12288, %s26, [#allocation3], 256, 256, 16
    $region9: #{mlp_forward.1} parent=1 // pred_fallthru
      _
    // Predicated region
    $region10: #{mlp_forward.1} parent=1 // pred_check
      _
    $region11: #{mlp_forward.1} parent=1 // pred_check_branch
      %33 = sbr.rel (0) target = $region13
    $region12: #{mlp_forward.1} parent=1 // pred_region
      _
    $region13: #{mlp_forward.1} parent=1 // pred_fallthru
      _
    // Predicated region
    $region14: #{mlp_forward.1} parent=1 // pred_check
      _
    $region15: #{mlp_forward.1} parent=1 // pred_check_branch
      %35 = sbr.rel (0) target = $region17
    $region16: #{mlp_forward.1} parent=1 // pred_region
      %37 = vsyncadd [#allocation5], 0
      %s38 = sshll.u32 %s3, 4
      %s39 = int_to_ptr.hbm [resolvable:$true] %s38
      %s40 = sshll.u32 [#allocation4], 4
      %s41 = int_to_ptr.vmem [resolvable:$true] %s40
      %46 = dma.hbm_to_vmem [thread:$0]  %s39, 8192, %s41, [#allocation5], 128, 128, 8
    $region17: #{mlp_forward.1} parent=1 // pred_fallthru
      _
    // Predicated region
    $region18: #{mlp_forward.1} parent=1 // pred_check
      _
    $region19: #{mlp_forward.1} parent=1 // pred_check_branch
      %48 = sbr.rel (0) target = $region21
    $region20: #{mlp_forward.1} parent=1 // pred_region
      _
    $region21: #{mlp_forward.1} parent=1 // pred_fallthru
      _
    // Predicated region
    $region22: #{mlp_forward.1} parent=1 // pred_check
      _
    $region23: #{mlp_forward.1} parent=1 // pred_check_branch
      %50 = sbr.rel (0) target = $region25
    $region24: #{mlp_forward.1} parent=1 // pred_region
      %52 = vsyncadd [#allocation5], 0
      %s53 = sshll.u32 %s5, 4
      %s54 = int_to_ptr.hbm [resolvable:$true] %s53
      %s55 = sshll.u32 [#allocation6], 4
      %s56 = int_to_ptr.vmem [resolvable:$true] %s55
      %61 = dma.hbm_to_vmem [thread:$0]  %s54, 8192, %s56, [#allocation5], 256, 256, 16
    $region25: #{mlp_forward.1} parent=1 // pred_fallthru
      _
    // Predicated region
    $region26: #{mlp_forward.1} parent=1 // pred_check
      _
    $region27: #{mlp_forward.1} parent=1 // pred_check_branch
      %63 = sbr.rel (0) target = $region29
    $region28: #{mlp_forward.1} parent=1 // pred_region
      _
    $region29: #{mlp_forward.1} parent=1 // pred_fallthru
      _
    // Predicated region
    $region30: #{mlp_forward.1} parent=1 // pred_check
      _
    $region31: #{mlp_forward.1} parent=1 // pred_check_branch
      %65 = sbr.rel (0) target = $region33
    $region32: #{mlp_forward.1} parent=1 // pred_region
      %67 = vsyncadd [#allocation8], 0
      %s68 = sshll.u32 %s7, 4
      %s69 = int_to_ptr.hbm [resolvable:$true] %s68
      %s70 = sshll.u32 [#allocation7], 4
      %s71 = int_to_ptr.vmem [resolvable:$true] %s70
      %76 = dma.hbm_to_vmem [thread:$0]  %s69, 4096, %s71, [#allocation8], 64, 64, 4
    $region33: #{mlp_forward.1} parent=1 // pred_fallthru
      _
    // Predicated region
    $region34: #{mlp_forward.1} parent=1 // pred_check
      _
    $region35: #{mlp_forward.1} parent=1 // pred_check_branch
      %78 = sbr.rel (0) target = $region37
    $region36: #{mlp_forward.1} parent=1 // pred_region
      _
    $region37: #{mlp_forward.1} parent=1 // pred_fallthru
      _
    // Predicated region
    $region38: #{mlp_forward.1} parent=1 // pred_check
      _
    $region39: #{mlp_forward.1} parent=1 // pred_check_branch
      %80 = sbr.rel (0) target = $region41
    $region40: #{mlp_forward.1} parent=1 // pred_region
      %82 = dma.done [#allocation3], 12288
    $region41: #{mlp_forward.1} parent=1 // pred_fallthru
      _
    // Predicated region
    $region42: #{mlp_forward.1} parent=1 // pred_check
      _
    $region43: #{mlp_forward.1} parent=1 // pred_check_branch
      %84 = sbr.rel (0) target = $region45
    $region44: #{mlp_forward.1} parent=1 // pred_region
      %86 = dma.done [#allocation5], 8192
    $region45: #{mlp_forward.1} parent=1 // pred_fallthru
      _
    // Predicated region
    $region46: #{mlp_forward.1} parent=1 // pred_check
      _
    $region47: #{mlp_forward.1} parent=1 // pred_check_branch
      %88 = sbr.rel (0) target = $region49
    $region48: #{mlp_forward.1} parent=1 // pred_region
      %90 = dma.done [#allocation5], 8192
    $region49: #{mlp_forward.1} parent=1 // pred_fallthru
      _
    // Predicated region
    $region50: #{mlp_forward.1} parent=1 // pred_check
      _
    $region51: #{mlp_forward.1} parent=1 // pred_check_branch
      %92 = sbr.rel (0) target = $region53
    $region52: #{mlp_forward.1} parent=1 // pred_region
      %94 = dma.done [#allocation8], 4096
    $region53: #{mlp_forward.1} parent=1 // pred_fallthru
      _
    %v95 = vld [vmem:[%s0] sm:$0xff]
    %v96 = vld [vmem:[%s0 + $0x8] sm:$0xf]
    %v97 = vld [vmem:[%s0 + $0xc] sm:$0xff]
    %v98 = vld [vmem:[%s0 + $0x14] sm:$0xf]
    %v99 = vld [vmem:[#allocation2] sm:$0xff]
    %v100 = vld [vmem:[#allocation2 + $0x8] sm:$0xff]
    %v101 = vld [vmem:[#allocation2 + $0x10] sm:$0xff]
    %v102 = vld [vmem:[#allocation2 + $0x18] sm:$0xff]
    %v103 = vld [vmem:[#allocation2 + $0x20] sm:$0xff]
    %v104 = vld [vmem:[#allocation2 + $0x28] sm:$0xff]
    %v105 = vld [vmem:[#allocation2 + $0x30] sm:$0xff]
    %v106 = vld [vmem:[#allocation2 + $0x38] sm:$0xff]
    %v107 = vld [vmem:[#allocation2 + $0x40] sm:$0xff]
    %v108 = vld [vmem:[#allocation2 + $0x48] sm:$0xff]
    %v109 = vld [vmem:[#allocation2 + $0x50] sm:$0xff]
    %v110 = vld [vmem:[#allocation2 + $0x58] sm:$0xff]
    %v111 = vld [vmem:[#allocation2 + $0x60] sm:$0xff]
    %v112 = vld [vmem:[#allocation2 + $0x68] sm:$0xff]
    %v113 = vld [vmem:[#allocation2 + $0x70] sm:$0xff]
    %v114 = vld [vmem:[#allocation2 + $0x78] sm:$0xff]
    %v115 = vld [vmem:[#allocation2 + $0x80] sm:$0xff]
    %v116 = vld [vmem:[#allocation2 + $0x88] sm:$0xff]
    %v117 = vld [vmem:[#allocation2 + $0x90] sm:$0xff]
    %v118 = vld [vmem:[#allocation2 + $0x98] sm:$0xff]
    %v119 = vld [vmem:[#allocation2 + $0xa0] sm:$0xff]
    %v120 = vld [vmem:[#allocation2 + $0xa8] sm:$0xff]
    %v121 = vld [vmem:[#allocation2 + $0xb0] sm:$0xff]
    %v122 = vld [vmem:[#allocation2 + $0xb8] sm:$0xff]
    %v123 = vld [vmem:[#allocation2 + $0xc0] sm:$0xff]
    %v124 = vld [vmem:[#allocation2 + $0xc8] sm:$0xff]
    %v125 = vld [vmem:[#allocation2 + $0xd0] sm:$0xff]
    %v126 = vld [vmem:[#allocation2 + $0xd8] sm:$0xff]
    %v127 = vld [vmem:[#allocation2 + $0xe0] sm:$0xff]
    %v128 = vld [vmem:[#allocation2 + $0xe8] sm:$0xff]
    %v129 = vld [vmem:[#allocation2 + $0xf0] sm:$0xff]
    %v130 = vld [vmem:[#allocation2 + $0xf8] sm:$0xff]
    %v131 = vld [vmem:[#allocation2 + $0x100] sm:$0xff]
    %v132 = vld [vmem:[#allocation2 + $0x108] sm:$0xff]
    %v133 = vld [vmem:[#allocation2 + $0x110] sm:$0xff]
    %v134 = vld [vmem:[#allocation2 + $0x118] sm:$0xff]
    %v135 = vld [vmem:[#allocation2 + $0x120] sm:$0xff]
    %v136 = vld [vmem:[#allocation2 + $0x128] sm:$0xff]
    %v137 = vld [vmem:[#allocation2 + $0x130] sm:$0xff]
    %v138 = vld [vmem:[#allocation2 + $0x138] sm:$0xff]
    %v139 = vld [vmem:[#allocation2 + $0x140] sm:$0xff]
    %v140 = vld [vmem:[#allocation2 + $0x148] sm:$0xff]
    %v141 = vld [vmem:[#allocation2 + $0x150] sm:$0xff]
    %v142 = vld [vmem:[#allocation2 + $0x158] sm:$0xff]
    %v143 = vld [vmem:[#allocation2 + $0x160] sm:$0xff]
    %v144 = vld [vmem:[#allocation2 + $0x168] sm:$0xff]
    %v145 = vld [vmem:[#allocation2 + $0x170] sm:$0xff]
    %v146 = vld [vmem:[#allocation2 + $0x178] sm:$0xff]
    %v147 = vld [vmem:[#allocation2 + $0x180] sm:$0xff]
    %v148 = vld [vmem:[#allocation2 + $0x188] sm:$0xff]
    %v149 = vld [vmem:[#allocation2 + $0x190] sm:$0xff]
    %v150 = vld [vmem:[#allocation2 + $0x198] sm:$0xff]
    %v151 = vld [vmem:[#allocation2 + $0x1a0] sm:$0xff]
    %v152 = vld [vmem:[#allocation2 + $0x1a8] sm:$0xff]
    %v153 = vld [vmem:[#allocation2 + $0x1b0] sm:$0xff]
    %v154 = vld [vmem:[#allocation2 + $0x1b8] sm:$0xff]
    %v155 = vld [vmem:[#allocation2 + $0x1c0] sm:$0xff]
    %v156 = vld [vmem:[#allocation2 + $0x1c8] sm:$0xff]
    %v157 = vld [vmem:[#allocation2 + $0x1d0] sm:$0xff]
    %v158 = vld [vmem:[#allocation2 + $0x1d8] sm:$0xff]
    %v159 = vld [vmem:[#allocation2 + $0x1e0] sm:$0xff]
    %v160 = vld [vmem:[#allocation2 + $0x1e8] sm:$0xff]
    %v161 = vld [vmem:[#allocation2 + $0x1f0] sm:$0xff]
    %v162 = vld [vmem:[#allocation2 + $0x1f8] sm:$0xff]
    %v163 = vld [vmem:[#allocation2 + $0x200] sm:$0xff]
    %v164 = vld [vmem:[#allocation2 + $0x208] sm:$0xff]
    %v165 = vld [vmem:[#allocation2 + $0x210] sm:$0xff]
    %v166 = vld [vmem:[#allocation2 + $0x218] sm:$0xff]
    %v167 = vld [vmem:[#allocation2 + $0x220] sm:$0xff]
    %v168 = vld [vmem:[#allocation2 + $0x228] sm:$0xff]
    %v169 = vld [vmem:[#allocation2 + $0x230] sm:$0xff]
    %v170 = vld [vmem:[#allocation2 + $0x238] sm:$0xff]
    %v171 = vld [vmem:[#allocation2 + $0x240] sm:$0xff]
    %v172 = vld [vmem:[#allocation2 + $0x248] sm:$0xff]
    %v173 = vld [vmem:[#allocation2 + $0x250] sm:$0xff]
    %v174 = vld [vmem:[#allocation2 + $0x258] sm:$0xff]
    %v175 = vld [vmem:[#allocation2 + $0x260] sm:$0xff]
    %v176 = vld [vmem:[#allocation2 + $0x268] sm:$0xff]
    %v177 = vld [vmem:[#allocation2 + $0x270] sm:$0xff]
    %v178 = vld [vmem:[#allocation2 + $0x278] sm:$0xff]
    %v179 = vld [vmem:[#allocation2 + $0x280] sm:$0xff]
    %v180 = vld [vmem:[#allocation2 + $0x288] sm:$0xff]
    %v181 = vld [vmem:[#allocation2 + $0x290] sm:$0xff]
    %v182 = vld [vmem:[#allocation2 + $0x298] sm:$0xff]
    %v183 = vld [vmem:[#allocation2 + $0x2a0] sm:$0xff]
    %v184 = vld [vmem:[#allocation2 + $0x2a8] sm:$0xff]
    %v185 = vld [vmem:[#allocation2 + $0x2b0] sm:$0xff]
    %v186 = vld [vmem:[#allocation2 + $0x2b8] sm:$0xff]
    %v187 = vld [vmem:[#allocation2 + $0x2c0] sm:$0xff]
    %v188 = vld [vmem:[#allocation2 + $0x2c8] sm:$0xff]
    %v189 = vld [vmem:[#allocation2 + $0x2d0] sm:$0xff]
    %v190 = vld [vmem:[#allocation2 + $0x2d8] sm:$0xff]
    %v191 = vld [vmem:[#allocation2 + $0x2e0] sm:$0xff]
    %v192 = vld [vmem:[#allocation2 + $0x2e8] sm:$0xff]
    %v193 = vld [vmem:[#allocation2 + $0x2f0] sm:$0xff]
    %v194 = vld [vmem:[#allocation2 + $0x2f8] sm:$0xff]
    %v195 = vld [vmem:[%s2] sm:$0xf]
    %v197 = vperm.slane %v195, 0
    %v198 = vperm.slane %v195, 1
    %v199 = vperm.slane %v195, 2
    %v200 = vperm.slane %v195, 3
    %v209 = vunpack.c.l.b16 %v95
    %v210 = vunpack.c.h.b16 %v95
    %v211 = vunpack.c.l.b16 %v96
    %v212 = vunpack.c.l.b16 %v97
    %v213 = vunpack.c.h.b16 %v97
    %v214 = vunpack.c.l.b16 %v98
    %v215 = vpack.c.b16 %v212, %v209
    %v216 = vpack.c.b16 %v213, %v210
    %v217 = vpack.c.b16 %v214, %v211
    %v317 = vunpack.c.l.b16 %v99
    %v318 = vunpack.c.h.b16 %v99
    %v319 = vunpack.c.l.b16 %v100
    %v320 = vunpack.c.h.b16 %v100
    %v321 = vunpack.c.l.b16 %v101
    %v322 = vunpack.c.h.b16 %v101
    %v323 = vunpack.c.l.b16 %v102
    %v324 = vunpack.c.h.b16 %v102
    %v325 = vunpack.c.l.b16 %v103
    %v326 = vunpack.c.h.b16 %v103
    %v327 = vunpack.c.l.b16 %v104
    %v328 = vunpack.c.h.b16 %v104
    %v329 = vunpack.c.l.b16 %v105
    %v330 = vunpack.c.h.b16 %v105
    %v331 = vunpack.c.l.b16 %v106
    %v332 = vunpack.c.h.b16 %v106
    %v333 = vunpack.c.l.b16 %v107
    %v334 = vunpack.c.h.b16 %v107
    %v335 = vunpack.c.l.b16 %v108
    %v336 = vunpack.c.h.b16 %v108
    %v337 = vunpack.c.l.b16 %v109
    %v338 = vunpack.c.h.b16 %v109
    %v339 = vunpack.c.l.b16 %v110
    %v340 = vunpack.c.h.b16 %v110
    %v341 = vunpack.c.l.b16 %v111
    %v342 = vunpack.c.h.b16 %v111
    %v343 = vunpack.c.l.b16 %v112
    %v344 = vunpack.c.h.b16 %v112
    %v345 = vunpack.c.l.b16 %v113
    %v346 = vunpack.c.h.b16 %v113
    %v347 = vunpack.c.l.b16 %v114
    %v348 = vunpack.c.h.b16 %v114
    %v349 = vunpack.c.l.b16 %v115
    %v350 = vunpack.c.h.b16 %v115
    %v351 = vunpack.c.l.b16 %v116
    %v352 = vunpack.c.h.b16 %v116
    %v353 = vunpack.c.l.b16 %v117
    %v354 = vunpack.c.h.b16 %v117
    %v355 = vunpack.c.l.b16 %v118
    %v356 = vunpack.c.h.b16 %v118
    %v357 = vunpack.c.l.b16 %v119
    %v358 = vunpack.c.h.b16 %v119
    %v359 = vunpack.c.l.b16 %v120
    %v360 = vunpack.c.h.b16 %v120
    %v361 = vunpack.c.l.b16 %v121
    %v362 = vunpack.c.h.b16 %v121
    %v363 = vunpack.c.l.b16 %v122
    %v364 = vunpack.c.h.b16 %v122
    %v365 = vunpack.c.l.b16 %v123
    %v366 = vunpack.c.h.b16 %v123
    %v367 = vunpack.c.l.b16 %v124
    %v368 = vunpack.c.h.b16 %v124
    %v369 = vunpack.c.l.b16 %v125
    %v370 = vunpack.c.h.b16 %v125
    %v371 = vunpack.c.l.b16 %v126
    %v372 = vunpack.c.h.b16 %v126
    %v373 = vunpack.c.l.b16 %v127
    %v374 = vunpack.c.h.b16 %v127
    %v375 = vunpack.c.l.b16 %v128
    %v376 = vunpack.c.h.b16 %v128
    %v377 = vunpack.c.l.b16 %v129
    %v378 = vunpack.c.h.b16 %v129
    %v379 = vunpack.c.l.b16 %v130
    %v380 = vunpack.c.h.b16 %v130
    %v381 = vunpack.c.l.b16 %v131
    %v382 = vunpack.c.h.b16 %v131
    %v383 = vunpack.c.l.b16 %v132
    %v384 = vunpack.c.h.b16 %v132
    %v385 = vunpack.c.l.b16 %v133
    %v386 = vunpack.c.h.b16 %v133
    %v387 = vunpack.c.l.b16 %v134
    %v388 = vunpack.c.h.b16 %v134
    %v389 = vunpack.c.l.b16 %v135
    %v390 = vunpack.c.h.b16 %v135
    %v391 = vunpack.c.l.b16 %v136
    %v392 = vunpack.c.h.b16 %v136
    %v393 = vunpack.c.l.b16 %v137
    %v394 = vunpack.c.h.b16 %v137
    %v395 = vunpack.c.l.b16 %v138
    %v396 = vunpack.c.h.b16 %v138
    %v397 = vunpack.c.l.b16 %v139
    %v398 = vunpack.c.h.b16 %v139
    %v399 = vunpack.c.l.b16 %v140
    %v400 = vunpack.c.h.b16 %v140
    %v401 = vunpack.c.l.b16 %v141
    %v402 = vunpack.c.h.b16 %v141
    %v403 = vunpack.c.l.b16 %v142
    %v404 = vunpack.c.h.b16 %v142
    %v405 = vunpack.c.l.b16 %v143
    %v406 = vunpack.c.h.b16 %v143
    %v407 = vunpack.c.l.b16 %v144
    %v408 = vunpack.c.h.b16 %v144
    %v409 = vunpack.c.l.b16 %v145
    %v410 = vunpack.c.h.b16 %v145
    %v411 = vunpack.c.l.b16 %v146
    %v412 = vunpack.c.h.b16 %v146
    %v413 = vunpack.c.l.b16 %v147
    %v414 = vunpack.c.h.b16 %v147
    %v415 = vunpack.c.l.b16 %v148
    %v416 = vunpack.c.h.b16 %v148
    %v417 = vunpack.c.l.b16 %v149
    %v418 = vunpack.c.h.b16 %v149
    %v419 = vunpack.c.l.b16 %v150
    %v420 = vunpack.c.h.b16 %v150
    %v421 = vunpack.c.l.b16 %v151
    %v422 = vunpack.c.h.b16 %v151
    %v423 = vunpack.c.l.b16 %v152
    %v424 = vunpack.c.h.b16 %v152
    %v425 = vunpack.c.l.b16 %v153
    %v426 = vunpack.c.h.b16 %v153
    %v427 = vunpack.c.l.b16 %v154
    %v428 = vunpack.c.h.b16 %v154
    %v429 = vunpack.c.l.b16 %v155
    %v430 = vunpack.c.h.b16 %v155
    %v431 = vunpack.c.l.b16 %v156
    %v432 = vunpack.c.h.b16 %v156
    %v433 = vunpack.c.l.b16 %v157
    %v434 = vunpack.c.h.b16 %v157
    %v435 = vunpack.c.l.b16 %v158
    %v436 = vunpack.c.h.b16 %v158
    %v437 = vunpack.c.l.b16 %v159
    %v438 = vunpack.c.h.b16 %v159
    %v439 = vunpack.c.l.b16 %v160
    %v440 = vunpack.c.h.b16 %v160
    %v441 = vunpack.c.l.b16 %v161
    %v442 = vunpack.c.h.b16 %v161
    %v443 = vunpack.c.l.b16 %v162
    %v444 = vunpack.c.h.b16 %v162
    %v445 = vunpack.c.l.b16 %v163
    %v446 = vunpack.c.h.b16 %v163
    %v447 = vunpack.c.l.b16 %v164
    %v448 = vunpack.c.h.b16 %v164
    %v449 = vunpack.c.l.b16 %v165
    %v450 = vunpack.c.h.b16 %v165
    %v451 = vunpack.c.l.b16 %v166
    %v452 = vunpack.c.h.b16 %v166
    %v453 = vunpack.c.l.b16 %v167
    %v454 = vunpack.c.h.b16 %v167
    %v455 = vunpack.c.l.b16 %v168
    %v456 = vunpack.c.h.b16 %v168
    %v457 = vunpack.c.l.b16 %v169
    %v458 = vunpack.c.h.b16 %v169
    %v459 = vunpack.c.l.b16 %v170
    %v460 = vunpack.c.h.b16 %v170
    %v461 = vunpack.c.l.b16 %v171
    %v462 = vunpack.c.h.b16 %v171
    %v463 = vunpack.c.l.b16 %v172
    %v464 = vunpack.c.h.b16 %v172
    %v465 = vunpack.c.l.b16 %v173
    %v466 = vunpack.c.h.b16 %v173
    %v467 = vunpack.c.l.b16 %v174
    %v468 = vunpack.c.h.b16 %v174
    %v469 = vunpack.c.l.b16 %v175
    %v470 = vunpack.c.h.b16 %v175
    %v471 = vunpack.c.l.b16 %v176
    %v472 = vunpack.c.h.b16 %v176
    %v473 = vunpack.c.l.b16 %v177
    %v474 = vunpack.c.h.b16 %v177
    %v475 = vunpack.c.l.b16 %v178
    %v476 = vunpack.c.h.b16 %v178
    %v477 = vunpack.c.l.b16 %v179
    %v478 = vunpack.c.h.b16 %v179
    %v479 = vunpack.c.l.b16 %v180
    %v480 = vunpack.c.h.b16 %v180
    %v481 = vunpack.c.l.b16 %v181
    %v482 = vunpack.c.h.b16 %v181
    %v483 = vunpack.c.l.b16 %v182
    %v484 = vunpack.c.h.b16 %v182
    %v485 = vunpack.c.l.b16 %v183
    %v486 = vunpack.c.h.b16 %v183
    %v487 = vunpack.c.l.b16 %v184
    %v488 = vunpack.c.h.b16 %v184
    %v489 = vunpack.c.l.b16 %v185
    %v490 = vunpack.c.h.b16 %v185
    %v491 = vunpack.c.l.b16 %v186
    %v492 = vunpack.c.h.b16 %v186
    %v493 = vunpack.c.l.b16 %v187
    %v494 = vunpack.c.h.b16 %v187
    %v495 = vunpack.c.l.b16 %v188
    %v496 = vunpack.c.h.b16 %v188
    %v497 = vunpack.c.l.b16 %v189
    %v498 = vunpack.c.h.b16 %v189
    %v499 = vunpack.c.l.b16 %v190
    %v500 = vunpack.c.h.b16 %v190
    %v501 = vunpack.c.l.b16 %v191
    %v502 = vunpack.c.h.b16 %v191
    %v503 = vunpack.c.l.b16 %v192
    %v504 = vunpack.c.h.b16 %v192
    %v505 = vunpack.c.l.b16 %v193
    %v506 = vunpack.c.h.b16 %v193
    %v507 = vunpack.c.l.b16 %v194
    %v508 = vunpack.c.h.b16 %v194
    %v509 = vpack.c.b16 %v321, %v317
    %v510 = vpack.c.b16 %v322, %v318
    %v511 = vpack.c.b16 %v323, %v319
    %v512 = vpack.c.b16 %v324, %v320
    %v513 = vpack.c.b16 %v329, %v325
    %v514 = vpack.c.b16 %v330, %v326
    %v515 = vpack.c.b16 %v331, %v327
    %v516 = vpack.c.b16 %v332, %v328
    %v517 = vpack.c.b16 %v337, %v333
    %v518 = vpack.c.b16 %v338, %v334
    %v519 = vpack.c.b16 %v339, %v335
    %v520 = vpack.c.b16 %v340, %v336
    %v521 = vpack.c.b16 %v345, %v341
    %v522 = vpack.c.b16 %v346, %v342
    %v523 = vpack.c.b16 %v347, %v343
    %v524 = vpack.c.b16 %v348, %v344
    %v525 = vpack.c.b16 %v353, %v349
    %v526 = vpack.c.b16 %v354, %v350
    %v527 = vpack.c.b16 %v355, %v351
    %v528 = vpack.c.b16 %v356, %v352
    %v529 = vpack.c.b16 %v361, %v357
    %v530 = vpack.c.b16 %v362, %v358
    %v531 = vpack.c.b16 %v363, %v359
    %v532 = vpack.c.b16 %v364, %v360
    %v533 = vpack.c.b16 %v369, %v365
    %v534 = vpack.c.b16 %v370, %v366
    %v535 = vpack.c.b16 %v371, %v367
    %v536 = vpack.c.b16 %v372, %v368
    %v537 = vpack.c.b16 %v377, %v373
    %v538 = vpack.c.b16 %v378, %v374
    %v539 = vpack.c.b16 %v379, %v375
    %v540 = vpack.c.b16 %v380, %v376
    %v541 = vpack.c.b16 %v385, %v381
    %v542 = vpack.c.b16 %v386, %v382
    %v543 = vpack.c.b16 %v387, %v383
    %v544 = vpack.c.b16 %v388, %v384
    %v545 = vpack.c.b16 %v393, %v389
    %v546 = vpack.c.b16 %v394, %v390
    %v547 = vpack.c.b16 %v395, %v391
    %v548 = vpack.c.b16 %v396, %v392
    %v549 = vpack.c.b16 %v401, %v397
    %v550 = vpack.c.b16 %v402, %v398
    %v551 = vpack.c.b16 %v403, %v399
    %v552 = vpack.c.b16 %v404, %v400
    %v553 = vpack.c.b16 %v409, %v405
    %v554 = vpack.c.b16 %v410, %v406
    %v555 = vpack.c.b16 %v411, %v407
    %v556 = vpack.c.b16 %v412, %v408
    %v557 = vpack.c.b16 %v417, %v413
    %v558 = vpack.c.b16 %v418, %v414
    %v559 = vpack.c.b16 %v419, %v415
    %v560 = vpack.c.b16 %v420, %v416
    %v561 = vpack.c.b16 %v425, %v421
    %v562 = vpack.c.b16 %v426, %v422
    %v563 = vpack.c.b16 %v427, %v423
    %v564 = vpack.c.b16 %v428, %v424
    %v565 = vpack.c.b16 %v433, %v429
    %v566 = vpack.c.b16 %v434, %v430
    %v567 = vpack.c.b16 %v435, %v431
    %v568 = vpack.c.b16 %v436, %v432
    %v569 = vpack.c.b16 %v441, %v437
    %v570 = vpack.c.b16 %v442, %v438
    %v571 = vpack.c.b16 %v443, %v439
    %v572 = vpack.c.b16 %v444, %v440
    %v573 = vpack.c.b16 %v449, %v445
    %v574 = vpack.c.b16 %v450, %v446
    %v575 = vpack.c.b16 %v451, %v447
    %v576 = vpack.c.b16 %v452, %v448
    %v577 = vpack.c.b16 %v457, %v453
    %v578 = vpack.c.b16 %v458, %v454
    %v579 = vpack.c.b16 %v459, %v455
    %v580 = vpack.c.b16 %v460, %v456
    %v581 = vpack.c.b16 %v465, %v461
    %v582 = vpack.c.b16 %v466, %v462
    %v583 = vpack.c.b16 %v467, %v463
    %v584 = vpack.c.b16 %v468, %v464
    %v585 = vpack.c.b16 %v473, %v469
    %v586 = vpack.c.b16 %v474, %v470
    %v587 = vpack.c.b16 %v475, %v471
    %v588 = vpack.c.b16 %v476, %v472
    %v589 = vpack.c.b16 %v481, %v477
    %v590 = vpack.c.b16 %v482, %v478
    %v591 = vpack.c.b16 %v483, %v479
    %v592 = vpack.c.b16 %v484, %v480
    %v593 = vpack.c.b16 %v489, %v485
    %v594 = vpack.c.b16 %v490, %v486
    %v595 = vpack.c.b16 %v491, %v487
    %v596 = vpack.c.b16 %v492, %v488
    %v597 = vpack.c.b16 %v497, %v493
    %v598 = vpack.c.b16 %v498, %v494
    %v599 = vpack.c.b16 %v499, %v495
    %v600 = vpack.c.b16 %v500, %v496
    %v601 = vpack.c.b16 %v505, %v501
    %v602 = vpack.c.b16 %v506, %v502
    %v603 = vpack.c.b16 %v507, %v503
    %v604 = vpack.c.b16 %v508, %v504
    %701 = vmatpush.bf16.msra.mxu0 %v537
    %702 = vmatpush.bf16.msra.mxu0 %v533
    %703 = vmatpush.bf16.msra.mxu0 %v529
    %704 = vmatpush.bf16.msra.mxu0 %v525
    %705 = vmatpush.bf16.msra.mxu0 %v521
    %706 = vmatpush.bf16.msra.mxu0 %v517
    %707 = vmatpush.bf16.msra.mxu0 %v513
    %708 = vmatpush.bf16.msra.mxu0 %v509
    %709 = vmatmul.bf16.gmra.mxu0 %v215
    %v710 = vpop.f32.mrf.mxu0
    %v711 = vadd.f32 %v197, %v710
    %v712 = vpop.f32.mrf.mxu0
    %v713 = vadd.f32 %v197, %v712
    %714 = vdwg.mxu0
    %715 = vmatpush.bf16.msra.mxu0 %v569
    %716 = vmatpush.bf16.msra.mxu0 %v565
    %717 = vmatpush.bf16.msra.mxu0 %v561
    %718 = vmatpush.bf16.msra.mxu0 %v557
    %719 = vmatpush.bf16.msra.mxu0 %v553
    %720 = vmatpush.bf16.msra.mxu0 %v549
    %721 = vmatpush.bf16.msra.mxu0 %v545
    %722 = vmatpush.bf16.msra.mxu0 %v541
    %723 = vmatmul.bf16.gmra.mxu0 %v216
    %v724 = vpop.f32.mrf.mxu0
    %v725 = vadd.f32 %v711, %v724
    %v726 = vpop.f32.mrf.mxu0
    %v727 = vadd.f32 %v713, %v726
    %728 = vdwg.mxu0
    %729 = vmatpush.bf16.msra.mxu0 %v601
    %730 = vmatpush.bf16.msra.mxu0 %v597
    %731 = vmatpush.bf16.msra.mxu0 %v593
    %732 = vmatpush.bf16.msra.mxu0 %v589
    %733 = vmatpush.bf16.msra.mxu0 %v585
    %734 = vmatpush.bf16.msra.mxu0 %v581
    %735 = vmatpush.bf16.msra.mxu0 %v577
    %736 = vmatpush.bf16.msra.mxu0 %v573
    %737 = vmatmul.bf16.gmra.mxu0 %v217
    %v738 = vpop.f32.mrf.mxu0
    %v739 = vadd.f32 %v725, %v738
    %v740 = vpop.f32.mrf.mxu0
    %v741 = vadd.f32 %v727, %v740
    %742 = vdwg.mxu0
    %743 = vmatpush.bf16.msra.mxu0 %v538
    %744 = vmatpush.bf16.msra.mxu0 %v534
    %745 = vmatpush.bf16.msra.mxu0 %v530
    %746 = vmatpush.bf16.msra.mxu0 %v526
    %747 = vmatpush.bf16.msra.mxu0 %v522
    %748 = vmatpush.bf16.msra.mxu0 %v518
    %749 = vmatpush.bf16.msra.mxu0 %v514
    %750 = vmatpush.bf16.msra.mxu0 %v510
    %751 = vmatmul.bf16.gmra.mxu0 %v215
    %v752 = vpop.f32.mrf.mxu0
    %v753 = vadd.f32 %v198, %v752
    %v754 = vpop.f32.mrf.mxu0
    %v755 = vadd.f32 %v198, %v754
    %756 = vdwg.mxu0
    %757 = vmatpush.bf16.msra.mxu0 %v570
    %758 = vmatpush.bf16.msra.mxu0 %v566
    %759 = vmatpush.bf16.msra.mxu0 %v562
    %760 = vmatpush.bf16.msra.mxu0 %v558
    %761 = vmatpush.bf16.msra.mxu0 %v554
    %762 = vmatpush.bf16.msra.mxu0 %v550
    %763 = vmatpush.bf16.msra.mxu0 %v546
    %764 = vmatpush.bf16.msra.mxu0 %v542
    %765 = vmatmul.bf16.gmra.mxu0 %v216
    %v766 = vpop.f32.mrf.mxu0
    %v767 = vadd.f32 %v753, %v766
    %v768 = vpop.f32.mrf.mxu0
    %v769 = vadd.f32 %v755, %v768
    %770 = vdwg.mxu0
    %771 = vmatpush.bf16.msra.mxu0 %v602
    %772 = vmatpush.bf16.msra.mxu0 %v598
    %773 = vmatpush.bf16.msra.mxu0 %v594
    %774 = vmatpush.bf16.msra.mxu0 %v590
    %775 = vmatpush.bf16.msra.mxu0 %v586
    %776 = vmatpush.bf16.msra.mxu0 %v582
    %777 = vmatpush.bf16.msra.mxu0 %v578
    %778 = vmatpush.bf16.msra.mxu0 %v574
    %779 = vmatmul.bf16.gmra.mxu0 %v217
    %v780 = vpop.f32.mrf.mxu0
    %v781 = vadd.f32 %v767, %v780
    %v782 = vpop.f32.mrf.mxu0
    %v783 = vadd.f32 %v769, %v782
    %784 = vdwg.mxu0
    %785 = vmatpush.bf16.msra.mxu0 %v539
    %786 = vmatpush.bf16.msra.mxu0 %v535
    %787 = vmatpush.bf16.msra.mxu0 %v531
    %788 = vmatpush.bf16.msra.mxu0 %v527
    %789 = vmatpush.bf16.msra.mxu0 %v523
    %790 = vmatpush.bf16.msra.mxu0 %v519
    %791 = vmatpush.bf16.msra.mxu0 %v515
    %792 = vmatpush.bf16.msra.mxu0 %v511
    %793 = vmatmul.bf16.gmra.mxu0 %v215
    %v794 = vpop.f32.mrf.mxu0
    %v795 = vadd.f32 %v199, %v794
    %v796 = vpop.f32.mrf.mxu0
    %v797 = vadd.f32 %v199, %v796
    %798 = vdwg.mxu0
    %799 = vmatpush.bf16.msra.mxu0 %v571
    %800 = vmatpush.bf16.msra.mxu0 %v567
    %801 = vmatpush.bf16.msra.mxu0 %v563
    %802 = vmatpush.bf16.msra.mxu0 %v559
    %803 = vmatpush.bf16.msra.mxu0 %v555
    %804 = vmatpush.bf16.msra.mxu0 %v551
    %805 = vmatpush.bf16.msra.mxu0 %v547
    %806 = vmatpush.bf16.msra.mxu0 %v543
    %807 = vmatmul.bf16.gmra.mxu0 %v216
    %v808 = vpop.f32.mrf.mxu0
    %v809 = vadd.f32 %v795, %v808
    %v810 = vpop.f32.mrf.mxu0
    %v811 = vadd.f32 %v797, %v810
    %812 = vdwg.mxu0
    %813 = vmatpush.bf16.msra.mxu0 %v603
    %814 = vmatpush.bf16.msra.mxu0 %v599
    %815 = vmatpush.bf16.msra.mxu0 %v595
    %816 = vmatpush.bf16.msra.mxu0 %v591
    %817 = vmatpush.bf16.msra.mxu0 %v587
    %818 = vmatpush.bf16.msra.mxu0 %v583
    %819 = vmatpush.bf16.msra.mxu0 %v579
    %820 = vmatpush.bf16.msra.mxu0 %v575
    %821 = vmatmul.bf16.gmra.mxu0 %v217
    %v822 = vpop.f32.mrf.mxu0
    %v823 = vadd.f32 %v809, %v822
    %v824 = vpop.f32.mrf.mxu0
    %v825 = vadd.f32 %v811, %v824
    %826 = vdwg.mxu0
    %827 = vmatpush.bf16.msra.mxu0 %v540
    %828 = vmatpush.bf16.msra.mxu0 %v536
    %829 = vmatpush.bf16.msra.mxu0 %v532
    %830 = vmatpush.bf16.msra.mxu0 %v528
    %831 = vmatpush.bf16.msra.mxu0 %v524
    %832 = vmatpush.bf16.msra.mxu0 %v520
    %833 = vmatpush.bf16.msra.mxu0 %v516
    %834 = vmatpush.bf16.msra.mxu0 %v512
    %835 = vmatmul.bf16.gmra.mxu0 %v215
    %v836 = vpop.f32.mrf.mxu0
    %v837 = vadd.f32 %v200, %v836
    %v838 = vpop.f32.mrf.mxu0
    %v839 = vadd.f32 %v200, %v838
    %840 = vdwg.mxu0
    %841 = vmatpush.bf16.msra.mxu0 %v572
    %842 = vmatpush.bf16.msra.mxu0 %v568
    %843 = vmatpush.bf16.msra.mxu0 %v564
    %844 = vmatpush.bf16.msra.mxu0 %v560
    %845 = vmatpush.bf16.msra.mxu0 %v556
    %846 = vmatpush.bf16.msra.mxu0 %v552
    %847 = vmatpush.bf16.msra.mxu0 %v548
    %848 = vmatpush.bf16.msra.mxu0 %v544
    %849 = vmatmul.bf16.gmra.mxu0 %v216
    %v850 = vpop.f32.mrf.mxu0
    %v851 = vadd.f32 %v837, %v850
    %v852 = vpop.f32.mrf.mxu0
    %v853 = vadd.f32 %v839, %v852
    %854 = vdwg.mxu0
    %855 = vmatpush.bf16.msra.mxu0 %v604
    %856 = vmatpush.bf16.msra.mxu0 %v600
    %857 = vmatpush.bf16.msra.mxu0 %v596
    %858 = vmatpush.bf16.msra.mxu0 %v592
    %859 = vmatpush.bf16.msra.mxu0 %v588
    %860 = vmatpush.bf16.msra.mxu0 %v584
    %861 = vmatpush.bf16.msra.mxu0 %v580
    %862 = vmatpush.bf16.msra.mxu0 %v576
    %863 = vmatmul.bf16.gmra.mxu0 %v217
    %v864 = vpop.f32.mrf.mxu0
    %v865 = vadd.f32 %v851, %v864
    %v866 = vpop.f32.mrf.mxu0
    %v867 = vadd.f32 %v853, %v866
    %868 = vdwg.mxu0
    %v869 = vmax.f32 %v739, 0.0
    %v870 = vmax.f32 %v781, 0.0
    %v871 = vmax.f32 %v823, 0.0
    %v872 = vmax.f32 %v865, 0.0
    %v873 = vmax.f32 %v741, 0.0
    %v874 = vmax.f32 %v783, 0.0
    %v875 = vmax.f32 %v825, 0.0
    %v876 = vmax.f32 %v867, 0.0
    %v877 = vpack.c.bf16 %v873, %v869
    %v878 = vpack.c.bf16 %v874, %v870
    %v879 = vpack.c.bf16 %v875, %v871
    %v880 = vpack.c.bf16 %v876, %v872
    %v881 = vld [vmem:[#allocation4] sm:$0xff]
    %v882 = vld [vmem:[#allocation4 + $0x8] sm:$0xff]
    %v883 = vld [vmem:[#allocation4 + $0x10] sm:$0xff]
    %v884 = vld [vmem:[#allocation4 + $0x18] sm:$0xff]
    %v885 = vld [vmem:[#allocation4 + $0x20] sm:$0xff]
    %v886 = vld [vmem:[#allocation4 + $0x28] sm:$0xff]
    %v887 = vld [vmem:[#allocation4 + $0x30] sm:$0xff]
    %v888 = vld [vmem:[#allocation4 + $0x38] sm:$0xff]
    %v889 = vld [vmem:[#allocation4 + $0x40] sm:$0xff]
    %v890 = vld [vmem:[#allocation4 + $0x48] sm:$0xff]
    %v891 = vld [vmem:[#allocation4 + $0x50] sm:$0xff]
    %v892 = vld [vmem:[#allocation4 + $0x58] sm:$0xff]
    %v893 = vld [vmem:[#allocation4 + $0x60] sm:$0xff]
    %v894 = vld [vmem:[#allocation4 + $0x68] sm:$0xff]
    %v895 = vld [vmem:[#allocation4 + $0x70] sm:$0xff]
    %v896 = vld [vmem:[#allocation4 + $0x78] sm:$0xff]
    %v897 = vld [vmem:[#allocation4 + $0x80] sm:$0xff]
    %v898 = vld [vmem:[#allocation4 + $0x88] sm:$0xff]
    %v899 = vld [vmem:[#allocation4 + $0x90] sm:$0xff]
    %v900 = vld [vmem:[#allocation4 + $0x98] sm:$0xff]
    %v901 = vld [vmem:[#allocation4 + $0xa0] sm:$0xff]
    %v902 = vld [vmem:[#allocation4 + $0xa8] sm:$0xff]
    %v903 = vld [vmem:[#allocation4 + $0xb0] sm:$0xff]
    %v904 = vld [vmem:[#allocation4 + $0xb8] sm:$0xff]
    %v905 = vld [vmem:[#allocation4 + $0xc0] sm:$0xff]
    %v906 = vld [vmem:[#allocation4 + $0xc8] sm:$0xff]
    %v907 = vld [vmem:[#allocation4 + $0xd0] sm:$0xff]
    %v908 = vld [vmem:[#allocation4 + $0xd8] sm:$0xff]
    %v909 = vld [vmem:[#allocation4 + $0xe0] sm:$0xff]
    %v910 = vld [vmem:[#allocation4 + $0xe8] sm:$0xff]
    %v911 = vld [vmem:[#allocation4 + $0xf0] sm:$0xff]
    %v912 = vld [vmem:[#allocation4 + $0xf8] sm:$0xff]
    %v913 = vld [vmem:[#allocation4 + $0x100] sm:$0xff]
    %v914 = vld [vmem:[#allocation4 + $0x108] sm:$0xff]
    %v915 = vld [vmem:[#allocation4 + $0x110] sm:$0xff]
    %v916 = vld [vmem:[#allocation4 + $0x118] sm:$0xff]
    %v917 = vld [vmem:[#allocation4 + $0x120] sm:$0xff]
    %v918 = vld [vmem:[#allocation4 + $0x128] sm:$0xff]
    %v919 = vld [vmem:[#allocation4 + $0x130] sm:$0xff]
    %v920 = vld [vmem:[#allocation4 + $0x138] sm:$0xff]
    %v921 = vld [vmem:[#allocation4 + $0x140] sm:$0xff]
    %v922 = vld [vmem:[#allocation4 + $0x148] sm:$0xff]
    %v923 = vld [vmem:[#allocation4 + $0x150] sm:$0xff]
    %v924 = vld [vmem:[#allocation4 + $0x158] sm:$0xff]
    %v925 = vld [vmem:[#allocation4 + $0x160] sm:$0xff]
    %v926 = vld [vmem:[#allocation4 + $0x168] sm:$0xff]
    %v927 = vld [vmem:[#allocation4 + $0x170] sm:$0xff]
    %v928 = vld [vmem:[#allocation4 + $0x178] sm:$0xff]
    %v929 = vld [vmem:[#allocation4 + $0x180] sm:$0xff]
    %v930 = vld [vmem:[#allocation4 + $0x188] sm:$0xff]
    %v931 = vld [vmem:[#allocation4 + $0x190] sm:$0xff]
    %v932 = vld [vmem:[#allocation4 + $0x198] sm:$0xff]
    %v933 = vld [vmem:[#allocation4 + $0x1a0] sm:$0xff]
    %v934 = vld [vmem:[#allocation4 + $0x1a8] sm:$0xff]
    %v935 = vld [vmem:[#allocation4 + $0x1b0] sm:$0xff]
    %v936 = vld [vmem:[#allocation4 + $0x1b8] sm:$0xff]
    %v937 = vld [vmem:[#allocation4 + $0x1c0] sm:$0xff]
    %v938 = vld [vmem:[#allocation4 + $0x1c8] sm:$0xff]
    %v939 = vld [vmem:[#allocation4 + $0x1d0] sm:$0xff]
    %v940 = vld [vmem:[#allocation4 + $0x1d8] sm:$0xff]
    %v941 = vld [vmem:[#allocation4 + $0x1e0] sm:$0xff]
    %v942 = vld [vmem:[#allocation4 + $0x1e8] sm:$0xff]
    %v943 = vld [vmem:[#allocation4 + $0x1f0] sm:$0xff]
    %v944 = vld [vmem:[#allocation4 + $0x1f8] sm:$0xff]
    %v945 = vld [vmem:[%s4] sm:$0x3]
    %v947 = vperm.slane %v945, 0
    %v948 = vperm.slane %v945, 1
    %v1015 = vunpack.c.l.b16 %v881
    %v1016 = vunpack.c.h.b16 %v881
    %v1017 = vunpack.c.l.b16 %v882
    %v1018 = vunpack.c.h.b16 %v882
    %v1019 = vunpack.c.l.b16 %v883
    %v1020 = vunpack.c.h.b16 %v883
    %v1021 = vunpack.c.l.b16 %v884
    %v1022 = vunpack.c.h.b16 %v884
    %v1023 = vunpack.c.l.b16 %v885
    %v1024 = vunpack.c.h.b16 %v885
    %v1025 = vunpack.c.l.b16 %v886
    %v1026 = vunpack.c.h.b16 %v886
    %v1027 = vunpack.c.l.b16 %v887
    %v1028 = vunpack.c.h.b16 %v887
    %v1029 = vunpack.c.l.b16 %v888
    %v1030 = vunpack.c.h.b16 %v888
    %v1031 = vunpack.c.l.b16 %v889
    %v1032 = vunpack.c.h.b16 %v889
    %v1033 = vunpack.c.l.b16 %v890
    %v1034 = vunpack.c.h.b16 %v890
    %v1035 = vunpack.c.l.b16 %v891
    %v1036 = vunpack.c.h.b16 %v891
    %v1037 = vunpack.c.l.b16 %v892
    %v1038 = vunpack.c.h.b16 %v892
    %v1039 = vunpack.c.l.b16 %v893
    %v1040 = vunpack.c.h.b16 %v893
    %v1041 = vunpack.c.l.b16 %v894
    %v1042 = vunpack.c.h.b16 %v894
    %v1043 = vunpack.c.l.b16 %v895
    %v1044 = vunpack.c.h.b16 %v895
    %v1045 = vunpack.c.l.b16 %v896
    %v1046 = vunpack.c.h.b16 %v896
    %v1047 = vunpack.c.l.b16 %v897
    %v1048 = vunpack.c.h.b16 %v897
    %v1049 = vunpack.c.l.b16 %v898
    %v1050 = vunpack.c.h.b16 %v898
    %v1051 = vunpack.c.l.b16 %v899
    %v1052 = vunpack.c.h.b16 %v899
    %v1053 = vunpack.c.l.b16 %v900
    %v1054 = vunpack.c.h.b16 %v900
    %v1055 = vunpack.c.l.b16 %v901
    %v1056 = vunpack.c.h.b16 %v901
    %v1057 = vunpack.c.l.b16 %v902
    %v1058 = vunpack.c.h.b16 %v902
    %v1059 = vunpack.c.l.b16 %v903
    %v1060 = vunpack.c.h.b16 %v903
    %v1061 = vunpack.c.l.b16 %v904
    %v1062 = vunpack.c.h.b16 %v904
    %v1063 = vunpack.c.l.b16 %v905
    %v1064 = vunpack.c.h.b16 %v905
    %v1065 = vunpack.c.l.b16 %v906
    %v1066 = vunpack.c.h.b16 %v906
    %v1067 = vunpack.c.l.b16 %v907
    %v1068 = vunpack.c.h.b16 %v907
    %v1069 = vunpack.c.l.b16 %v908
    %v1070 = vunpack.c.h.b16 %v908
    %v1071 = vunpack.c.l.b16 %v909
    %v1072 = vunpack.c.h.b16 %v909
    %v1073 = vunpack.c.l.b16 %v910
    %v1074 = vunpack.c.h.b16 %v910
    %v1075 = vunpack.c.l.b16 %v911
    %v1076 = vunpack.c.h.b16 %v911
    %v1077 = vunpack.c.l.b16 %v912
    %v1078 = vunpack.c.h.b16 %v912
    %v1079 = vunpack.c.l.b16 %v913
    %v1080 = vunpack.c.h.b16 %v913
    %v1081 = vunpack.c.l.b16 %v914
    %v1082 = vunpack.c.h.b16 %v914
    %v1083 = vunpack.c.l.b16 %v915
    %v1084 = vunpack.c.h.b16 %v915
    %v1085 = vunpack.c.l.b16 %v916
    %v1086 = vunpack.c.h.b16 %v916
    %v1087 = vunpack.c.l.b16 %v917
    %v1088 = vunpack.c.h.b16 %v917
    %v1089 = vunpack.c.l.b16 %v918
    %v1090 = vunpack.c.h.b16 %v918
    %v1091 = vunpack.c.l.b16 %v919
    %v1092 = vunpack.c.h.b16 %v919
    %v1093 = vunpack.c.l.b16 %v920
    %v1094 = vunpack.c.h.b16 %v920
    %v1095 = vunpack.c.l.b16 %v921
    %v1096 = vunpack.c.h.b16 %v921
    %v1097 = vunpack.c.l.b16 %v922
    %v1098 = vunpack.c.h.b16 %v922
    %v1099 = vunpack.c.l.b16 %v923
    %v1100 = vunpack.c.h.b16 %v923
    %v1101 = vunpack.c.l.b16 %v924
    %v1102 = vunpack.c.h.b16 %v924
    %v1103 = vunpack.c.l.b16 %v925
    %v1104 = vunpack.c.h.b16 %v925
    %v1105 = vunpack.c.l.b16 %v926
    %v1106 = vunpack.c.h.b16 %v926
    %v1107 = vunpack.c.l.b16 %v927
    %v1108 = vunpack.c.h.b16 %v927
    %v1109 = vunpack.c.l.b16 %v928
    %v1110 = vunpack.c.h.b16 %v928
    %v1111 = vunpack.c.l.b16 %v929
    %v1112 = vunpack.c.h.b16 %v929
    %v1113 = vunpack.c.l.b16 %v930
    %v1114 = vunpack.c.h.b16 %v930
    %v1115 = vunpack.c.l.b16 %v931
    %v1116 = vunpack.c.h.b16 %v931
    %v1117 = vunpack.c.l.b16 %v932
    %v1118 = vunpack.c.h.b16 %v932
    %v1119 = vunpack.c.l.b16 %v933
    %v1120 = vunpack.c.h.b16 %v933
    %v1121 = vunpack.c.l.b16 %v934
    %v1122 = vunpack.c.h.b16 %v934
    %v1123 = vunpack.c.l.b16 %v935
    %v1124 = vunpack.c.h.b16 %v935
    %v1125 = vunpack.c.l.b16 %v936
    %v1126 = vunpack.c.h.b16 %v936
    %v1127 = vunpack.c.l.b16 %v937
    %v1128 = vunpack.c.h.b16 %v937
    %v1129 = vunpack.c.l.b16 %v938
    %v1130 = vunpack.c.h.b16 %v938
    %v1131 = vunpack.c.l.b16 %v939
    %v1132 = vunpack.c.h.b16 %v939
    %v1133 = vunpack.c.l.b16 %v940
    %v1134 = vunpack.c.h.b16 %v940
    %v1135 = vunpack.c.l.b16 %v941
    %v1136 = vunpack.c.h.b16 %v941
    %v1137 = vunpack.c.l.b16 %v942
    %v1138 = vunpack.c.h.b16 %v942
    %v1139 = vunpack.c.l.b16 %v943
    %v1140 = vunpack.c.h.b16 %v943
    %v1141 = vunpack.c.l.b16 %v944
    %v1142 = vunpack.c.h.b16 %v944
    %v1143 = vpack.c.b16 %v1017, %v1015
    %v1144 = vpack.c.b16 %v1018, %v1016
    %v1145 = vpack.c.b16 %v1021, %v1019
    %v1146 = vpack.c.b16 %v1022, %v1020
    %v1147 = vpack.c.b16 %v1025, %v1023
    %v1148 = vpack.c.b16 %v1026, %v1024
    %v1149 = vpack.c.b16 %v1029, %v1027
    %v1150 = vpack.c.b16 %v1030, %v1028
    %v1151 = vpack.c.b16 %v1033, %v1031
    %v1152 = vpack.c.b16 %v1034, %v1032
    %v1153 = vpack.c.b16 %v1037, %v1035
    %v1154 = vpack.c.b16 %v1038, %v1036
    %v1155 = vpack.c.b16 %v1041, %v1039
    %v1156 = vpack.c.b16 %v1042, %v1040
    %v1157 = vpack.c.b16 %v1045, %v1043
    %v1158 = vpack.c.b16 %v1046, %v1044
    %v1159 = vpack.c.b16 %v1049, %v1047
    %v1160 = vpack.c.b16 %v1050, %v1048
    %v1161 = vpack.c.b16 %v1053, %v1051
    %v1162 = vpack.c.b16 %v1054, %v1052
    %v1163 = vpack.c.b16 %v1057, %v1055
    %v1164 = vpack.c.b16 %v1058, %v1056
    %v1165 = vpack.c.b16 %v1061, %v1059
    %v1166 = vpack.c.b16 %v1062, %v1060
    %v1167 = vpack.c.b16 %v1065, %v1063
    %v1168 = vpack.c.b16 %v1066, %v1064
    %v1169 = vpack.c.b16 %v1069, %v1067
    %v1170 = vpack.c.b16 %v1070, %v1068
    %v1171 = vpack.c.b16 %v1073, %v1071
    %v1172 = vpack.c.b16 %v1074, %v1072
    %v1173 = vpack.c.b16 %v1077, %v1075
    %v1174 = vpack.c.b16 %v1078, %v1076
    %v1175 = vpack.c.b16 %v1081, %v1079
    %v1176 = vpack.c.b16 %v1082, %v1080
    %v1177 = vpack.c.b16 %v1085, %v1083
    %v1178 = vpack.c.b16 %v1086, %v1084
    %v1179 = vpack.c.b16 %v1089, %v1087
    %v1180 = vpack.c.b16 %v1090, %v1088
    %v1181 = vpack.c.b16 %v1093, %v1091
    %v1182 = vpack.c.b16 %v1094, %v1092
    %v1183 = vpack.c.b16 %v1097, %v1095
    %v1184 = vpack.c.b16 %v1098, %v1096
    %v1185 = vpack.c.b16 %v1101, %v1099
    %v1186 = vpack.c.b16 %v1102, %v1100
    %v1187 = vpack.c.b16 %v1105, %v1103
    %v1188 = vpack.c.b16 %v1106, %v1104
    %v1189 = vpack.c.b16 %v1109, %v1107
    %v1190 = vpack.c.b16 %v1110, %v1108
    %v1191 = vpack.c.b16 %v1113, %v1111
    %v1192 = vpack.c.b16 %v1114, %v1112
    %v1193 = vpack.c.b16 %v1117, %v1115
    %v1194 = vpack.c.b16 %v1118, %v1116
    %v1195 = vpack.c.b16 %v1121, %v1119
    %v1196 = vpack.c.b16 %v1122, %v1120
    %v1197 = vpack.c.b16 %v1125, %v1123
    %v1198 = vpack.c.b16 %v1126, %v1124
    %v1199 = vpack.c.b16 %v1129, %v1127
    %v1200 = vpack.c.b16 %v1130, %v1128
    %v1201 = vpack.c.b16 %v1133, %v1131
    %v1202 = vpack.c.b16 %v1134, %v1132
    %v1203 = vpack.c.b16 %v1137, %v1135
    %v1204 = vpack.c.b16 %v1138, %v1136
    %v1205 = vpack.c.b16 %v1141, %v1139
    %v1206 = vpack.c.b16 %v1142, %v1140
    %1271 = vmatpush.bf16.msra.mxu0 %v1157
    %1272 = vmatpush.bf16.msra.mxu0 %v1155
    %1273 = vmatpush.bf16.msra.mxu0 %v1153
    %1274 = vmatpush.bf16.msra.mxu0 %v1151
    %1275 = vmatpush.bf16.msra.mxu0 %v1149
    %1276 = vmatpush.bf16.msra.mxu0 %v1147
    %1277 = vmatpush.bf16.msra.mxu0 %v1145
    %1278 = vmatpush.bf16.msra.mxu0 %v1143
    %1279 = vmatmul.bf16.gmra.mxu0 %v877
    %v1280 = vpop.f32.mrf.mxu0
    %v1281 = vadd.f32 %v947, %v1280
    %v1282 = vpop.f32.mrf.mxu0
    %v1283 = vadd.f32 %v947, %v1282
    %1284 = vdwg.mxu0
    %1285 = vmatpush.bf16.msra.mxu0 %v1173
    %1286 = vmatpush.bf16.msra.mxu0 %v1171
    %1287 = vmatpush.bf16.msra.mxu0 %v1169
    %1288 = vmatpush.bf16.msra.mxu0 %v1167
    %1289 = vmatpush.bf16.msra.mxu0 %v1165
    %1290 = vmatpush.bf16.msra.mxu0 %v1163
    %1291 = vmatpush.bf16.msra.mxu0 %v1161
    %1292 = vmatpush.bf16.msra.mxu0 %v1159
    %1293 = vmatmul.bf16.gmra.mxu0 %v878
    %v1294 = vpop.f32.mrf.mxu0
    %v1295 = vadd.f32 %v1281, %v1294
    %v1296 = vpop.f32.mrf.mxu0
    %v1297 = vadd.f32 %v1283, %v1296
    %1298 = vdwg.mxu0
    %1299 = vmatpush.bf16.msra.mxu0 %v1189
    %1300 = vmatpush.bf16.msra.mxu0 %v1187
    %1301 = vmatpush.bf16.msra.mxu0 %v1185
    %1302 = vmatpush.bf16.msra.mxu0 %v1183
    %1303 = vmatpush.bf16.msra.mxu0 %v1181
    %1304 = vmatpush.bf16.msra.mxu0 %v1179
    %1305 = vmatpush.bf16.msra.mxu0 %v1177
    %1306 = vmatpush.bf16.msra.mxu0 %v1175
    %1307 = vmatmul.bf16.gmra.mxu0 %v879
    %v1308 = vpop.f32.mrf.mxu0
    %v1309 = vadd.f32 %v1295, %v1308
    %v1310 = vpop.f32.mrf.mxu0
    %v1311 = vadd.f32 %v1297, %v1310
    %1312 = vdwg.mxu0
    %1313 = vmatpush.bf16.msra.mxu0 %v1205
    %1314 = vmatpush.bf16.msra.mxu0 %v1203
    %1315 = vmatpush.bf16.msra.mxu0 %v1201
    %1316 = vmatpush.bf16.msra.mxu0 %v1199
    %1317 = vmatpush.bf16.msra.mxu0 %v1197
    %1318 = vmatpush.bf16.msra.mxu0 %v1195
    %1319 = vmatpush.bf16.msra.mxu0 %v1193
    %1320 = vmatpush.bf16.msra.mxu0 %v1191
    %1321 = vmatmul.bf16.gmra.mxu0 %v880
    %v1322 = vpop.f32.mrf.mxu0
    %v1323 = vadd.f32 %v1309, %v1322
    %v1324 = vpop.f32.mrf.mxu0
    %v1325 = vadd.f32 %v1311, %v1324
    %1326 = vdwg.mxu0
    %1327 = vmatpush.bf16.msra.mxu0 %v1158
    %1328 = vmatpush.bf16.msra.mxu0 %v1156
    %1329 = vmatpush.bf16.msra.mxu0 %v1154
    %1330 = vmatpush.bf16.msra.mxu0 %v1152
    %1331 = vmatpush.bf16.msra.mxu0 %v1150
    %1332 = vmatpush.bf16.msra.mxu0 %v1148
    %1333 = vmatpush.bf16.msra.mxu0 %v1146
    %1334 = vmatpush.bf16.msra.mxu0 %v1144
    %1335 = vmatmul.bf16.gmra.mxu0 %v877
    %v1336 = vpop.f32.mrf.mxu0
    %v1337 = vadd.f32 %v948, %v1336
    %v1338 = vpop.f32.mrf.mxu0
    %v1339 = vadd.f32 %v948, %v1338
    %1340 = vdwg.mxu0
    %1341 = vmatpush.bf16.msra.mxu0 %v1174
    %1342 = vmatpush.bf16.msra.mxu0 %v1172
    %1343 = vmatpush.bf16.msra.mxu0 %v1170
    %1344 = vmatpush.bf16.msra.mxu0 %v1168
    %1345 = vmatpush.bf16.msra.mxu0 %v1166
    %1346 = vmatpush.bf16.msra.mxu0 %v1164
    %1347 = vmatpush.bf16.msra.mxu0 %v1162
    %1348 = vmatpush.bf16.msra.mxu0 %v1160
    %1349 = vmatmul.bf16.gmra.mxu0 %v878
    %v1350 = vpop.f32.mrf.mxu0
    %v1351 = vadd.f32 %v1337, %v1350
    %v1352 = vpop.f32.mrf.mxu0
    %v1353 = vadd.f32 %v1339, %v1352
    %1354 = vdwg.mxu0
    %1355 = vmatpush.bf16.msra.mxu0 %v1190
    %1356 = vmatpush.bf16.msra.mxu0 %v1188
    %1357 = vmatpush.bf16.msra.mxu0 %v1186
    %1358 = vmatpush.bf16.msra.mxu0 %v1184
    %1359 = vmatpush.bf16.msra.mxu0 %v1182
    %1360 = vmatpush.bf16.msra.mxu0 %v1180
    %1361 = vmatpush.bf16.msra.mxu0 %v1178
    %1362 = vmatpush.bf16.msra.mxu0 %v1176
    %1363 = vmatmul.bf16.gmra.mxu0 %v879
    %v1364 = vpop.f32.mrf.mxu0
    %v1365 = vadd.f32 %v1351, %v1364
    %v1366 = vpop.f32.mrf.mxu0
    %v1367 = vadd.f32 %v1353, %v1366
    %1368 = vdwg.mxu0
    %1369 = vmatpush.bf16.msra.mxu0 %v1206
    %1370 = vmatpush.bf16.msra.mxu0 %v1204
    %1371 = vmatpush.bf16.msra.mxu0 %v1202
    %1372 = vmatpush.bf16.msra.mxu0 %v1200
    %1373 = vmatpush.bf16.msra.mxu0 %v1198
    %1374 = vmatpush.bf16.msra.mxu0 %v1196
    %1375 = vmatpush.bf16.msra.mxu0 %v1194
    %1376 = vmatpush.bf16.msra.mxu0 %v1192
    %1377 = vmatmul.bf16.gmra.mxu0 %v880
    %v1378 = vpop.f32.mrf.mxu0
    %v1379 = vadd.f32 %v1365, %v1378
    %v1380 = vpop.f32.mrf.mxu0
    %v1381 = vadd.f32 %v1367, %v1380
    %1382 = vdwg.mxu0
    %v1383 = vmax.f32 %v1323, 0.0
    %v1384 = vmax.f32 %v1379, 0.0
    %v1385 = vmax.f32 %v1325, 0.0
    %v1386 = vmax.f32 %v1381, 0.0
    %v1387 = vpack.c.bf16 %v1385, %v1383
    %v1388 = vpack.c.bf16 %v1386, %v1384
    %v1389 = vld [vmem:[#allocation6] sm:$0xff]
    %v1390 = vld [vmem:[#allocation6 + $0x8] sm:$0xff]
    %v1391 = vld [vmem:[#allocation6 + $0x10] sm:$0xff]
    %v1392 = vld [vmem:[#allocation6 + $0x18] sm:$0xff]
    %v1393 = vld [vmem:[#allocation6 + $0x20] sm:$0xff]
    %v1394 = vld [vmem:[#allocation6 + $0x28] sm:$0xff]
    %v1395 = vld [vmem:[#allocation6 + $0x30] sm:$0xff]
    %v1396 = vld [vmem:[#allocation6 + $0x38] sm:$0xff]
    %v1397 = vld [vmem:[#allocation6 + $0x40] sm:$0xff]
    %v1398 = vld [vmem:[#allocation6 + $0x48] sm:$0xff]
    %v1399 = vld [vmem:[#allocation6 + $0x50] sm:$0xff]
    %v1400 = vld [vmem:[#allocation6 + $0x58] sm:$0xff]
    %v1401 = vld [vmem:[#allocation6 + $0x60] sm:$0xff]
    %v1402 = vld [vmem:[#allocation6 + $0x68] sm:$0xff]
    %v1403 = vld [vmem:[#allocation6 + $0x70] sm:$0xff]
    %v1404 = vld [vmem:[#allocation6 + $0x78] sm:$0xff]
    %v1405 = vld [vmem:[#allocation6 + $0x80] sm:$0xff]
    %v1406 = vld [vmem:[#allocation6 + $0x88] sm:$0xff]
    %v1407 = vld [vmem:[#allocation6 + $0x90] sm:$0xff]
    %v1408 = vld [vmem:[#allocation6 + $0x98] sm:$0xff]
    %v1409 = vld [vmem:[#allocation6 + $0xa0] sm:$0xff]
    %v1410 = vld [vmem:[#allocation6 + $0xa8] sm:$0xff]
    %v1411 = vld [vmem:[#allocation6 + $0xb0] sm:$0xff]
    %v1412 = vld [vmem:[#allocation6 + $0xb8] sm:$0xff]
    %v1413 = vld [vmem:[#allocation6 + $0xc0] sm:$0xff]
    %v1414 = vld [vmem:[#allocation6 + $0xc8] sm:$0xff]
    %v1415 = vld [vmem:[#allocation6 + $0xd0] sm:$0xff]
    %v1416 = vld [vmem:[#allocation6 + $0xd8] sm:$0xff]
    %v1417 = vld [vmem:[#allocation6 + $0xe0] sm:$0xff]
    %v1418 = vld [vmem:[#allocation6 + $0xe8] sm:$0xff]
    %v1419 = vld [vmem:[#allocation6 + $0xf0] sm:$0xff]
    %v1420 = vld [vmem:[#allocation6 + $0xf8] sm:$0xff]
    %v1421 = vld [vmem:[#allocation6 + $0x100] sm:$0xff]
    %v1422 = vld [vmem:[#allocation6 + $0x108] sm:$0xff]
    %v1423 = vld [vmem:[#allocation6 + $0x110] sm:$0xff]
    %v1424 = vld [vmem:[#allocation6 + $0x118] sm:$0xff]
    %v1425 = vld [vmem:[#allocation6 + $0x120] sm:$0xff]
    %v1426 = vld [vmem:[#allocation6 + $0x128] sm:$0xff]
    %v1427 = vld [vmem:[#allocation6 + $0x130] sm:$0xff]
    %v1428 = vld [vmem:[#allocation6 + $0x138] sm:$0xff]
    %v1429 = vld [vmem:[#allocation6 + $0x140] sm:$0xff]
    %v1430 = vld [vmem:[#allocation6 + $0x148] sm:$0xff]
    %v1431 = vld [vmem:[#allocation6 + $0x150] sm:$0xff]
    %v1432 = vld [vmem:[#allocation6 + $0x158] sm:$0xff]
    %v1433 = vld [vmem:[#allocation6 + $0x160] sm:$0xff]
    %v1434 = vld [vmem:[#allocation6 + $0x168] sm:$0xff]
    %v1435 = vld [vmem:[#allocation6 + $0x170] sm:$0xff]
    %v1436 = vld [vmem:[#allocation6 + $0x178] sm:$0xff]
    %v1437 = vld [vmem:[#allocation6 + $0x180] sm:$0xff]
    %v1438 = vld [vmem:[#allocation6 + $0x188] sm:$0xff]
    %v1439 = vld [vmem:[#allocation6 + $0x190] sm:$0xff]
    %v1440 = vld [vmem:[#allocation6 + $0x198] sm:$0xff]
    %v1441 = vld [vmem:[#allocation6 + $0x1a0] sm:$0xff]
    %v1442 = vld [vmem:[#allocation6 + $0x1a8] sm:$0xff]
    %v1443 = vld [vmem:[#allocation6 + $0x1b0] sm:$0xff]
    %v1444 = vld [vmem:[#allocation6 + $0x1b8] sm:$0xff]
    %v1445 = vld [vmem:[#allocation6 + $0x1c0] sm:$0xff]
    %v1446 = vld [vmem:[#allocation6 + $0x1c8] sm:$0xff]
    %v1447 = vld [vmem:[#allocation6 + $0x1d0] sm:$0xff]
    %v1448 = vld [vmem:[#allocation6 + $0x1d8] sm:$0xff]
    %v1449 = vld [vmem:[#allocation6 + $0x1e0] sm:$0xff]
    %v1450 = vld [vmem:[#allocation6 + $0x1e8] sm:$0xff]
    %v1451 = vld [vmem:[#allocation6 + $0x1f0] sm:$0xff]
    %v1452 = vld [vmem:[#allocation6 + $0x1f8] sm:$0xff]
    %v1453 = vld [vmem:[%s6] sm:$0xf]
    %v1455 = vperm.slane %v1453, 0
    %v1456 = vperm.slane %v1453, 1
    %v1457 = vperm.slane %v1453, 2
    %v1458 = vperm.slane %v1453, 3
    %v1527 = vunpack.c.l.b16 %v1389
    %v1528 = vunpack.c.h.b16 %v1389
    %v1529 = vunpack.c.l.b16 %v1390
    %v1530 = vunpack.c.h.b16 %v1390
    %v1531 = vunpack.c.l.b16 %v1391
    %v1532 = vunpack.c.h.b16 %v1391
    %v1533 = vunpack.c.l.b16 %v1392
    %v1534 = vunpack.c.h.b16 %v1392
    %v1535 = vunpack.c.l.b16 %v1393
    %v1536 = vunpack.c.h.b16 %v1393
    %v1537 = vunpack.c.l.b16 %v1394
    %v1538 = vunpack.c.h.b16 %v1394
    %v1539 = vunpack.c.l.b16 %v1395
    %v1540 = vunpack.c.h.b16 %v1395
    %v1541 = vunpack.c.l.b16 %v1396
    %v1542 = vunpack.c.h.b16 %v1396
    %v1543 = vunpack.c.l.b16 %v1397
    %v1544 = vunpack.c.h.b16 %v1397
    %v1545 = vunpack.c.l.b16 %v1398
    %v1546 = vunpack.c.h.b16 %v1398
    %v1547 = vunpack.c.l.b16 %v1399
    %v1548 = vunpack.c.h.b16 %v1399
    %v1549 = vunpack.c.l.b16 %v1400
    %v1550 = vunpack.c.h.b16 %v1400
    %v1551 = vunpack.c.l.b16 %v1401
    %v1552 = vunpack.c.h.b16 %v1401
    %v1553 = vunpack.c.l.b16 %v1402
    %v1554 = vunpack.c.h.b16 %v1402
    %v1555 = vunpack.c.l.b16 %v1403
    %v1556 = vunpack.c.h.b16 %v1403
    %v1557 = vunpack.c.l.b16 %v1404
    %v1558 = vunpack.c.h.b16 %v1404
    %v1559 = vunpack.c.l.b16 %v1405
    %v1560 = vunpack.c.h.b16 %v1405
    %v1561 = vunpack.c.l.b16 %v1406
    %v1562 = vunpack.c.h.b16 %v1406
    %v1563 = vunpack.c.l.b16 %v1407
    %v1564 = vunpack.c.h.b16 %v1407
    %v1565 = vunpack.c.l.b16 %v1408
    %v1566 = vunpack.c.h.b16 %v1408
    %v1567 = vunpack.c.l.b16 %v1409
    %v1568 = vunpack.c.h.b16 %v1409
    %v1569 = vunpack.c.l.b16 %v1410
    %v1570 = vunpack.c.h.b16 %v1410
    %v1571 = vunpack.c.l.b16 %v1411
    %v1572 = vunpack.c.h.b16 %v1411
    %v1573 = vunpack.c.l.b16 %v1412
    %v1574 = vunpack.c.h.b16 %v1412
    %v1575 = vunpack.c.l.b16 %v1413
    %v1576 = vunpack.c.h.b16 %v1413
    %v1577 = vunpack.c.l.b16 %v1414
    %v1578 = vunpack.c.h.b16 %v1414
    %v1579 = vunpack.c.l.b16 %v1415
    %v1580 = vunpack.c.h.b16 %v1415
    %v1581 = vunpack.c.l.b16 %v1416
    %v1582 = vunpack.c.h.b16 %v1416
    %v1583 = vunpack.c.l.b16 %v1417
    %v1584 = vunpack.c.h.b16 %v1417
    %v1585 = vunpack.c.l.b16 %v1418
    %v1586 = vunpack.c.h.b16 %v1418
    %v1587 = vunpack.c.l.b16 %v1419
    %v1588 = vunpack.c.h.b16 %v1419
    %v1589 = vunpack.c.l.b16 %v1420
    %v1590 = vunpack.c.h.b16 %v1420
    %v1591 = vunpack.c.l.b16 %v1421
    %v1592 = vunpack.c.h.b16 %v1421
    %v1593 = vunpack.c.l.b16 %v1422
    %v1594 = vunpack.c.h.b16 %v1422
    %v1595 = vunpack.c.l.b16 %v1423
    %v1596 = vunpack.c.h.b16 %v1423
    %v1597 = vunpack.c.l.b16 %v1424
    %v1598 = vunpack.c.h.b16 %v1424
    %v1599 = vunpack.c.l.b16 %v1425
    %v1600 = vunpack.c.h.b16 %v1425
    %v1601 = vunpack.c.l.b16 %v1426
    %v1602 = vunpack.c.h.b16 %v1426
    %v1603 = vunpack.c.l.b16 %v1427
    %v1604 = vunpack.c.h.b16 %v1427
    %v1605 = vunpack.c.l.b16 %v1428
    %v1606 = vunpack.c.h.b16 %v1428
    %v1607 = vunpack.c.l.b16 %v1429
    %v1608 = vunpack.c.h.b16 %v1429
    %v1609 = vunpack.c.l.b16 %v1430
    %v1610 = vunpack.c.h.b16 %v1430
    %v1611 = vunpack.c.l.b16 %v1431
    %v1612 = vunpack.c.h.b16 %v1431
    %v1613 = vunpack.c.l.b16 %v1432
    %v1614 = vunpack.c.h.b16 %v1432
    %v1615 = vunpack.c.l.b16 %v1433
    %v1616 = vunpack.c.h.b16 %v1433
    %v1617 = vunpack.c.l.b16 %v1434
    %v1618 = vunpack.c.h.b16 %v1434
    %v1619 = vunpack.c.l.b16 %v1435
    %v1620 = vunpack.c.h.b16 %v1435
    %v1621 = vunpack.c.l.b16 %v1436
    %v1622 = vunpack.c.h.b16 %v1436
    %v1623 = vunpack.c.l.b16 %v1437
    %v1624 = vunpack.c.h.b16 %v1437
    %v1625 = vunpack.c.l.b16 %v1438
    %v1626 = vunpack.c.h.b16 %v1438
    %v1627 = vunpack.c.l.b16 %v1439
    %v1628 = vunpack.c.h.b16 %v1439
    %v1629 = vunpack.c.l.b16 %v1440
    %v1630 = vunpack.c.h.b16 %v1440
    %v1631 = vunpack.c.l.b16 %v1441
    %v1632 = vunpack.c.h.b16 %v1441
    %v1633 = vunpack.c.l.b16 %v1442
    %v1634 = vunpack.c.h.b16 %v1442
    %v1635 = vunpack.c.l.b16 %v1443
    %v1636 = vunpack.c.h.b16 %v1443
    %v1637 = vunpack.c.l.b16 %v1444
    %v1638 = vunpack.c.h.b16 %v1444
    %v1639 = vunpack.c.l.b16 %v1445
    %v1640 = vunpack.c.h.b16 %v1445
    %v1641 = vunpack.c.l.b16 %v1446
    %v1642 = vunpack.c.h.b16 %v1446
    %v1643 = vunpack.c.l.b16 %v1447
    %v1644 = vunpack.c.h.b16 %v1447
    %v1645 = vunpack.c.l.b16 %v1448
    %v1646 = vunpack.c.h.b16 %v1448
    %v1647 = vunpack.c.l.b16 %v1449
    %v1648 = vunpack.c.h.b16 %v1449
    %v1649 = vunpack.c.l.b16 %v1450
    %v1650 = vunpack.c.h.b16 %v1450
    %v1651 = vunpack.c.l.b16 %v1451
    %v1652 = vunpack.c.h.b16 %v1451
    %v1653 = vunpack.c.l.b16 %v1452
    %v1654 = vunpack.c.h.b16 %v1452
    %v1655 = vpack.c.b16 %v1531, %v1527
    %v1656 = vpack.c.b16 %v1532, %v1528
    %v1657 = vpack.c.b16 %v1533, %v1529
    %v1658 = vpack.c.b16 %v1534, %v1530
    %v1659 = vpack.c.b16 %v1539, %v1535
    %v1660 = vpack.c.b16 %v1540, %v1536
    %v1661 = vpack.c.b16 %v1541, %v1537
    %v1662 = vpack.c.b16 %v1542, %v1538
    %v1663 = vpack.c.b16 %v1547, %v1543
    %v1664 = vpack.c.b16 %v1548, %v1544
    %v1665 = vpack.c.b16 %v1549, %v1545
    %v1666 = vpack.c.b16 %v1550, %v1546
    %v1667 = vpack.c.b16 %v1555, %v1551
    %v1668 = vpack.c.b16 %v1556, %v1552
    %v1669 = vpack.c.b16 %v1557, %v1553
    %v1670 = vpack.c.b16 %v1558, %v1554
    %v1671 = vpack.c.b16 %v1563, %v1559
    %v1672 = vpack.c.b16 %v1564, %v1560
    %v1673 = vpack.c.b16 %v1565, %v1561
    %v1674 = vpack.c.b16 %v1566, %v1562
    %v1675 = vpack.c.b16 %v1571, %v1567
    %v1676 = vpack.c.b16 %v1572, %v1568
    %v1677 = vpack.c.b16 %v1573, %v1569
    %v1678 = vpack.c.b16 %v1574, %v1570
    %v1679 = vpack.c.b16 %v1579, %v1575
    %v1680 = vpack.c.b16 %v1580, %v1576
    %v1681 = vpack.c.b16 %v1581, %v1577
    %v1682 = vpack.c.b16 %v1582, %v1578
    %v1683 = vpack.c.b16 %v1587, %v1583
    %v1684 = vpack.c.b16 %v1588, %v1584
    %v1685 = vpack.c.b16 %v1589, %v1585
    %v1686 = vpack.c.b16 %v1590, %v1586
    %v1687 = vpack.c.b16 %v1595, %v1591
    %v1688 = vpack.c.b16 %v1596, %v1592
    %v1689 = vpack.c.b16 %v1597, %v1593
    %v1690 = vpack.c.b16 %v1598, %v1594
    %v1691 = vpack.c.b16 %v1603, %v1599
    %v1692 = vpack.c.b16 %v1604, %v1600
    %v1693 = vpack.c.b16 %v1605, %v1601
    %v1694 = vpack.c.b16 %v1606, %v1602
    %v1695 = vpack.c.b16 %v1611, %v1607
    %v1696 = vpack.c.b16 %v1612, %v1608
    %v1697 = vpack.c.b16 %v1613, %v1609
    %v1698 = vpack.c.b16 %v1614, %v1610
    %v1699 = vpack.c.b16 %v1619, %v1615
    %v1700 = vpack.c.b16 %v1620, %v1616
    %v1701 = vpack.c.b16 %v1621, %v1617
    %v1702 = vpack.c.b16 %v1622, %v1618
    %v1703 = vpack.c.b16 %v1627, %v1623
    %v1704 = vpack.c.b16 %v1628, %v1624
    %v1705 = vpack.c.b16 %v1629, %v1625
    %v1706 = vpack.c.b16 %v1630, %v1626
    %v1707 = vpack.c.b16 %v1635, %v1631
    %v1708 = vpack.c.b16 %v1636, %v1632
    %v1709 = vpack.c.b16 %v1637, %v1633
    %v1710 = vpack.c.b16 %v1638, %v1634
    %v1711 = vpack.c.b16 %v1643, %v1639
    %v1712 = vpack.c.b16 %v1644, %v1640
    %v1713 = vpack.c.b16 %v1645, %v1641
    %v1714 = vpack.c.b16 %v1646, %v1642
    %v1715 = vpack.c.b16 %v1651, %v1647
    %v1716 = vpack.c.b16 %v1652, %v1648
    %v1717 = vpack.c.b16 %v1653, %v1649
    %v1718 = vpack.c.b16 %v1654, %v1650
    %1783 = vmatpush.bf16.msra.mxu0 %v1683
    %1784 = vmatpush.bf16.msra.mxu0 %v1679
    %1785 = vmatpush.bf16.msra.mxu0 %v1675
    %1786 = vmatpush.bf16.msra.mxu0 %v1671
    %1787 = vmatpush.bf16.msra.mxu0 %v1667
    %1788 = vmatpush.bf16.msra.mxu0 %v1663
    %1789 = vmatpush.bf16.msra.mxu0 %v1659
    %1790 = vmatpush.bf16.msra.mxu0 %v1655
    %1791 = vmatmul.bf16.gmra.mxu0 %v1387
    %v1792 = vpop.f32.mrf.mxu0
    %v1793 = vadd.f32 %v1455, %v1792
    %v1794 = vpop.f32.mrf.mxu0
    %v1795 = vadd.f32 %v1455, %v1794
    %1796 = vdwg.mxu0
    %1797 = vmatpush.bf16.msra.mxu0 %v1715
    %1798 = vmatpush.bf16.msra.mxu0 %v1711
    %1799 = vmatpush.bf16.msra.mxu0 %v1707
    %1800 = vmatpush.bf16.msra.mxu0 %v1703
    %1801 = vmatpush.bf16.msra.mxu0 %v1699
    %1802 = vmatpush.bf16.msra.mxu0 %v1695
    %1803 = vmatpush.bf16.msra.mxu0 %v1691
    %1804 = vmatpush.bf16.msra.mxu0 %v1687
    %1805 = vmatmul.bf16.gmra.mxu0 %v1388
    %v1806 = vpop.f32.mrf.mxu0
    %v1807 = vadd.f32 %v1793, %v1806
    %v1808 = vpop.f32.mrf.mxu0
    %v1809 = vadd.f32 %v1795, %v1808
    %1810 = vdwg.mxu0
    %1811 = vmatpush.bf16.msra.mxu0 %v1684
    %1812 = vmatpush.bf16.msra.mxu0 %v1680
    %1813 = vmatpush.bf16.msra.mxu0 %v1676
    %1814 = vmatpush.bf16.msra.mxu0 %v1672
    %1815 = vmatpush.bf16.msra.mxu0 %v1668
    %1816 = vmatpush.bf16.msra.mxu0 %v1664
    %1817 = vmatpush.bf16.msra.mxu0 %v1660
    %1818 = vmatpush.bf16.msra.mxu0 %v1656
    %1819 = vmatmul.bf16.gmra.mxu0 %v1387
    %v1820 = vpop.f32.mrf.mxu0
    %v1821 = vadd.f32 %v1456, %v1820
    %v1822 = vpop.f32.mrf.mxu0
    %v1823 = vadd.f32 %v1456, %v1822
    %1824 = vdwg.mxu0
    %1825 = vmatpush.bf16.msra.mxu0 %v1716
    %1826 = vmatpush.bf16.msra.mxu0 %v1712
    %1827 = vmatpush.bf16.msra.mxu0 %v1708
    %1828 = vmatpush.bf16.msra.mxu0 %v1704
    %1829 = vmatpush.bf16.msra.mxu0 %v1700
    %1830 = vmatpush.bf16.msra.mxu0 %v1696
    %1831 = vmatpush.bf16.msra.mxu0 %v1692
    %1832 = vmatpush.bf16.msra.mxu0 %v1688
    %1833 = vmatmul.bf16.gmra.mxu0 %v1388
    %v1834 = vpop.f32.mrf.mxu0
    %v1835 = vadd.f32 %v1821, %v1834
    %v1836 = vpop.f32.mrf.mxu0
    %v1837 = vadd.f32 %v1823, %v1836
    %1838 = vdwg.mxu0
    %1839 = vmatpush.bf16.msra.mxu0 %v1685
    %1840 = vmatpush.bf16.msra.mxu0 %v1681
    %1841 = vmatpush.bf16.msra.mxu0 %v1677
    %1842 = vmatpush.bf16.msra.mxu0 %v1673
    %1843 = vmatpush.bf16.msra.mxu0 %v1669
    %1844 = vmatpush.bf16.msra.mxu0 %v1665
    %1845 = vmatpush.bf16.msra.mxu0 %v1661
    %1846 = vmatpush.bf16.msra.mxu0 %v1657
    %1847 = vmatmul.bf16.gmra.mxu0 %v1387
    %v1848 = vpop.f32.mrf.mxu0
    %v1849 = vadd.f32 %v1457, %v1848
    %v1850 = vpop.f32.mrf.mxu0
    %v1851 = vadd.f32 %v1457, %v1850
    %1852 = vdwg.mxu0
    %1853 = vmatpush.bf16.msra.mxu0 %v1717
    %1854 = vmatpush.bf16.msra.mxu0 %v1713
    %1855 = vmatpush.bf16.msra.mxu0 %v1709
    %1856 = vmatpush.bf16.msra.mxu0 %v1705
    %1857 = vmatpush.bf16.msra.mxu0 %v1701
    %1858 = vmatpush.bf16.msra.mxu0 %v1697
    %1859 = vmatpush.bf16.msra.mxu0 %v1693
    %1860 = vmatpush.bf16.msra.mxu0 %v1689
    %1861 = vmatmul.bf16.gmra.mxu0 %v1388
    %v1862 = vpop.f32.mrf.mxu0
    %v1863 = vadd.f32 %v1849, %v1862
    %v1864 = vpop.f32.mrf.mxu0
    %v1865 = vadd.f32 %v1851, %v1864
    %1866 = vdwg.mxu0
    %1867 = vmatpush.bf16.msra.mxu0 %v1686
    %1868 = vmatpush.bf16.msra.mxu0 %v1682
    %1869 = vmatpush.bf16.msra.mxu0 %v1678
    %1870 = vmatpush.bf16.msra.mxu0 %v1674
    %1871 = vmatpush.bf16.msra.mxu0 %v1670
    %1872 = vmatpush.bf16.msra.mxu0 %v1666
    %1873 = vmatpush.bf16.msra.mxu0 %v1662
    %1874 = vmatpush.bf16.msra.mxu0 %v1658
    %1875 = vmatmul.bf16.gmra.mxu0 %v1387
    %v1876 = vpop.f32.mrf.mxu0
    %v1877 = vadd.f32 %v1458, %v1876
    %v1878 = vpop.f32.mrf.mxu0
    %v1879 = vadd.f32 %v1458, %v1878
    %1880 = vdwg.mxu0
    %1881 = vmatpush.bf16.msra.mxu0 %v1718
    %1882 = vmatpush.bf16.msra.mxu0 %v1714
    %1883 = vmatpush.bf16.msra.mxu0 %v1710
    %1884 = vmatpush.bf16.msra.mxu0 %v1706
    %1885 = vmatpush.bf16.msra.mxu0 %v1702
    %1886 = vmatpush.bf16.msra.mxu0 %v1698
    %1887 = vmatpush.bf16.msra.mxu0 %v1694
    %1888 = vmatpush.bf16.msra.mxu0 %v1690
    %1889 = vmatmul.bf16.gmra.mxu0 %v1388
    %v1890 = vpop.f32.mrf.mxu0
    %v1891 = vadd.f32 %v1877, %v1890
    %v1892 = vpop.f32.mrf.mxu0
    %v1893 = vadd.f32 %v1879, %v1892
    %1894 = vdwg.mxu0
    %v1895 = vmax.f32 %v1807, 0.0
    %v1896 = vmax.f32 %v1835, 0.0
    %v1897 = vmax.f32 %v1863, 0.0
    %v1898 = vmax.f32 %v1891, 0.0
    %v1899 = vmax.f32 %v1809, 0.0
    %v1900 = vmax.f32 %v1837, 0.0
    %v1901 = vmax.f32 %v1865, 0.0
    %v1902 = vmax.f32 %v1893, 0.0
    %v1903 = vpack.c.bf16 %v1899, %v1895
    %v1904 = vpack.c.bf16 %v1900, %v1896
    %v1905 = vpack.c.bf16 %v1901, %v1897
    %v1906 = vpack.c.bf16 %v1902, %v1898
    %v1907 = vld [vmem:[#allocation7] sm:$0xf]
    %v1908 = vld [vmem:[#allocation7 + $0x4] sm:$0xf]
    %v1909 = vld [vmem:[#allocation7 + $0x8] sm:$0xf]
    %v1910 = vld [vmem:[#allocation7 + $0xc] sm:$0xf]
    %v1911 = vld [vmem:[#allocation7 + $0x10] sm:$0xf]
    %v1912 = vld [vmem:[#allocation7 + $0x14] sm:$0xf]
    %v1913 = vld [vmem:[#allocation7 + $0x18] sm:$0xf]
    %v1914 = vld [vmem:[#allocation7 + $0x1c] sm:$0xf]
    %v1915 = vld [vmem:[#allocation7 + $0x20] sm:$0xf]
    %v1916 = vld [vmem:[#allocation7 + $0x24] sm:$0xf]
    %v1917 = vld [vmem:[#allocation7 + $0x28] sm:$0xf]
    %v1918 = vld [vmem:[#allocation7 + $0x2c] sm:$0xf]
    %v1919 = vld [vmem:[#allocation7 + $0x30] sm:$0xf]
    %v1920 = vld [vmem:[#allocation7 + $0x34] sm:$0xf]
    %v1921 = vld [vmem:[#allocation7 + $0x38] sm:$0xf]
    %v1922 = vld [vmem:[#allocation7 + $0x3c] sm:$0xf]
    %v1923 = vld [vmem:[#allocation7 + $0x40] sm:$0xf]
    %v1924 = vld [vmem:[#allocation7 + $0x44] sm:$0xf]
    %v1925 = vld [vmem:[#allocation7 + $0x48] sm:$0xf]
    %v1926 = vld [vmem:[#allocation7 + $0x4c] sm:$0xf]
    %v1927 = vld [vmem:[#allocation7 + $0x50] sm:$0xf]
    %v1928 = vld [vmem:[#allocation7 + $0x54] sm:$0xf]
    %v1929 = vld [vmem:[#allocation7 + $0x58] sm:$0xf]
    %v1930 = vld [vmem:[#allocation7 + $0x5c] sm:$0xf]
    %v1931 = vld [vmem:[#allocation7 + $0x60] sm:$0xf]
    %v1932 = vld [vmem:[#allocation7 + $0x64] sm:$0xf]
    %v1933 = vld [vmem:[#allocation7 + $0x68] sm:$0xf]
    %v1934 = vld [vmem:[#allocation7 + $0x6c] sm:$0xf]
    %v1935 = vld [vmem:[#allocation7 + $0x70] sm:$0xf]
    %v1936 = vld [vmem:[#allocation7 + $0x74] sm:$0xf]
    %v1937 = vld [vmem:[#allocation7 + $0x78] sm:$0xf]
    %v1938 = vld [vmem:[#allocation7 + $0x7c] sm:$0xf]
    %v1939 = vld [vmem:[#allocation7 + $0x80] sm:$0xf]
    %v1940 = vld [vmem:[#allocation7 + $0x84] sm:$0xf]
    %v1941 = vld [vmem:[#allocation7 + $0x88] sm:$0xf]
    %v1942 = vld [vmem:[#allocation7 + $0x8c] sm:$0xf]
    %v1943 = vld [vmem:[#allocation7 + $0x90] sm:$0xf]
    %v1944 = vld [vmem:[#allocation7 + $0x94] sm:$0xf]
    %v1945 = vld [vmem:[#allocation7 + $0x98] sm:$0xf]
    %v1946 = vld [vmem:[#allocation7 + $0x9c] sm:$0xf]
    %v1947 = vld [vmem:[#allocation7 + $0xa0] sm:$0xf]
    %v1948 = vld [vmem:[#allocation7 + $0xa4] sm:$0xf]
    %v1949 = vld [vmem:[#allocation7 + $0xa8] sm:$0xf]
    %v1950 = vld [vmem:[#allocation7 + $0xac] sm:$0xf]
    %v1951 = vld [vmem:[#allocation7 + $0xb0] sm:$0xf]
    %v1952 = vld [vmem:[#allocation7 + $0xb4] sm:$0xf]
    %v1953 = vld [vmem:[#allocation7 + $0xb8] sm:$0xf]
    %v1954 = vld [vmem:[#allocation7 + $0xbc] sm:$0xf]
    %v1955 = vld [vmem:[#allocation7 + $0xc0] sm:$0xf]
    %v1956 = vld [vmem:[#allocation7 + $0xc4] sm:$0xf]
    %v1957 = vld [vmem:[#allocation7 + $0xc8] sm:$0xf]
    %v1958 = vld [vmem:[#allocation7 + $0xcc] sm:$0xf]
    %v1959 = vld [vmem:[#allocation7 + $0xd0] sm:$0xf]
    %v1960 = vld [vmem:[#allocation7 + $0xd4] sm:$0xf]
    %v1961 = vld [vmem:[#allocation7 + $0xd8] sm:$0xf]
    %v1962 = vld [vmem:[#allocation7 + $0xdc] sm:$0xf]
    %v1963 = vld [vmem:[#allocation7 + $0xe0] sm:$0xf]
    %v1964 = vld [vmem:[#allocation7 + $0xe4] sm:$0xf]
    %v1965 = vld [vmem:[#allocation7 + $0xe8] sm:$0xf]
    %v1966 = vld [vmem:[#allocation7 + $0xec] sm:$0xf]
    %v1967 = vld [vmem:[#allocation7 + $0xf0] sm:$0xf]
    %v1968 = vld [vmem:[#allocation7 + $0xf4] sm:$0xf]
    %v1969 = vld [vmem:[#allocation7 + $0xf8] sm:$0xf]
    %v1970 = vld [vmem:[#allocation7 + $0xfc] sm:$0xf]
    %v1971 = vld [vmem:[%s8] sm:$0x1]
    %v1973 = vperm.slane %v1971, 0
    %v2039 = vunpack.c.l.b16 %v1907
    %v2040 = vunpack.c.l.b16 %v1908
    %v2041 = vunpack.c.l.b16 %v1909
    %v2042 = vunpack.c.l.b16 %v1910
    %v2043 = vunpack.c.l.b16 %v1911
    %v2044 = vunpack.c.l.b16 %v1912
    %v2045 = vunpack.c.l.b16 %v1913
    %v2046 = vunpack.c.l.b16 %v1914
    %v2047 = vunpack.c.l.b16 %v1915
    %v2048 = vunpack.c.l.b16 %v1916
    %v2049 = vunpack.c.l.b16 %v1917
    %v2050 = vunpack.c.l.b16 %v1918
    %v2051 = vunpack.c.l.b16 %v1919
    %v2052 = vunpack.c.l.b16 %v1920
    %v2053 = vunpack.c.l.b16 %v1921
    %v2054 = vunpack.c.l.b16 %v1922
    %v2055 = vunpack.c.l.b16 %v1923
    %v2056 = vunpack.c.l.b16 %v1924
    %v2057 = vunpack.c.l.b16 %v1925
    %v2058 = vunpack.c.l.b16 %v1926
    %v2059 = vunpack.c.l.b16 %v1927
    %v2060 = vunpack.c.l.b16 %v1928
    %v2061 = vunpack.c.l.b16 %v1929
    %v2062 = vunpack.c.l.b16 %v1930
    %v2063 = vunpack.c.l.b16 %v1931
    %v2064 = vunpack.c.l.b16 %v1932
    %v2065 = vunpack.c.l.b16 %v1933
    %v2066 = vunpack.c.l.b16 %v1934
    %v2067 = vunpack.c.l.b16 %v1935
    %v2068 = vunpack.c.l.b16 %v1936
    %v2069 = vunpack.c.l.b16 %v1937
    %v2070 = vunpack.c.l.b16 %v1938
    %v2071 = vunpack.c.l.b16 %v1939
    %v2072 = vunpack.c.l.b16 %v1940
    %v2073 = vunpack.c.l.b16 %v1941
    %v2074 = vunpack.c.l.b16 %v1942
    %v2075 = vunpack.c.l.b16 %v1943
    %v2076 = vunpack.c.l.b16 %v1944
    %v2077 = vunpack.c.l.b16 %v1945
    %v2078 = vunpack.c.l.b16 %v1946
    %v2079 = vunpack.c.l.b16 %v1947
    %v2080 = vunpack.c.l.b16 %v1948
    %v2081 = vunpack.c.l.b16 %v1949
    %v2082 = vunpack.c.l.b16 %v1950
    %v2083 = vunpack.c.l.b16 %v1951
    %v2084 = vunpack.c.l.b16 %v1952
    %v2085 = vunpack.c.l.b16 %v1953
    %v2086 = vunpack.c.l.b16 %v1954
    %v2087 = vunpack.c.l.b16 %v1955
    %v2088 = vunpack.c.l.b16 %v1956
    %v2089 = vunpack.c.l.b16 %v1957
    %v2090 = vunpack.c.l.b16 %v1958
    %v2091 = vunpack.c.l.b16 %v1959
    %v2092 = vunpack.c.l.b16 %v1960
    %v2093 = vunpack.c.l.b16 %v1961
    %v2094 = vunpack.c.l.b16 %v1962
    %v2095 = vunpack.c.l.b16 %v1963
    %v2096 = vunpack.c.l.b16 %v1964
    %v2097 = vunpack.c.l.b16 %v1965
    %v2098 = vunpack.c.l.b16 %v1966
    %v2099 = vunpack.c.l.b16 %v1967
    %v2100 = vunpack.c.l.b16 %v1968
    %v2101 = vunpack.c.l.b16 %v1969
    %v2102 = vunpack.c.l.b16 %v1970
    %v2103 = vpack.c.b16 %v2040, %v2039
    %v2104 = vpack.c.b16 %v2042, %v2041
    %v2105 = vpack.c.b16 %v2044, %v2043
    %v2106 = vpack.c.b16 %v2046, %v2045
    %v2107 = vpack.c.b16 %v2048, %v2047
    %v2108 = vpack.c.b16 %v2050, %v2049
    %v2109 = vpack.c.b16 %v2052, %v2051
    %v2110 = vpack.c.b16 %v2054, %v2053
    %v2111 = vpack.c.b16 %v2056, %v2055
    %v2112 = vpack.c.b16 %v2058, %v2057
    %v2113 = vpack.c.b16 %v2060, %v2059
    %v2114 = vpack.c.b16 %v2062, %v2061
    %v2115 = vpack.c.b16 %v2064, %v2063
    %v2116 = vpack.c.b16 %v2066, %v2065
    %v2117 = vpack.c.b16 %v2068, %v2067
    %v2118 = vpack.c.b16 %v2070, %v2069
    %v2119 = vpack.c.b16 %v2072, %v2071
    %v2120 = vpack.c.b16 %v2074, %v2073
    %v2121 = vpack.c.b16 %v2076, %v2075
    %v2122 = vpack.c.b16 %v2078, %v2077
    %v2123 = vpack.c.b16 %v2080, %v2079
    %v2124 = vpack.c.b16 %v2082, %v2081
    %v2125 = vpack.c.b16 %v2084, %v2083
    %v2126 = vpack.c.b16 %v2086, %v2085
    %v2127 = vpack.c.b16 %v2088, %v2087
    %v2128 = vpack.c.b16 %v2090, %v2089
    %v2129 = vpack.c.b16 %v2092, %v2091
    %v2130 = vpack.c.b16 %v2094, %v2093
    %v2131 = vpack.c.b16 %v2096, %v2095
    %v2132 = vpack.c.b16 %v2098, %v2097
    %v2133 = vpack.c.b16 %v2100, %v2099
    %v2134 = vpack.c.b16 %v2102, %v2101
    %2167 = vmatpush.bf16.msra.mxu0 %v2110
    %2168 = vmatpush.bf16.msra.mxu0 %v2109
    %2169 = vmatpush.bf16.msra.mxu0 %v2108
    %2170 = vmatpush.bf16.msra.mxu0 %v2107
    %2171 = vmatpush.bf16.msra.mxu0 %v2106
    %2172 = vmatpush.bf16.msra.mxu0 %v2105
    %2173 = vmatpush.bf16.msra.mxu0 %v2104
    %2174 = vmatpush.bf16.msra.mxu0 %v2103
    %2175 = vmatmul.bf16.gmra.mxu0 %v1903
    %v2176 = vpop.f32.mrf.mxu0
    %v2177 = vadd.f32 %v1973, %v2176
    %v2178 = vpop.f32.mrf.mxu0
    %v2179 = vadd.f32 %v1973, %v2178
    %2180 = vdwg.mxu0
    %2181 = vmatpush.bf16.msra.mxu0 %v2118
    %2182 = vmatpush.bf16.msra.mxu0 %v2117
    %2183 = vmatpush.bf16.msra.mxu0 %v2116
    %2184 = vmatpush.bf16.msra.mxu0 %v2115
    %2185 = vmatpush.bf16.msra.mxu0 %v2114
    %2186 = vmatpush.bf16.msra.mxu0 %v2113
    %2187 = vmatpush.bf16.msra.mxu0 %v2112
    %2188 = vmatpush.bf16.msra.mxu0 %v2111
    %2189 = vmatmul.bf16.gmra.mxu0 %v1904
    %v2190 = vpop.f32.mrf.mxu0
    %v2191 = vadd.f32 %v2177, %v2190
    %v2192 = vpop.f32.mrf.mxu0
    %v2193 = vadd.f32 %v2179, %v2192
    %2194 = vdwg.mxu0
    %2195 = vmatpush.bf16.msra.mxu0 %v2126
    %2196 = vmatpush.bf16.msra.mxu0 %v2125
    %2197 = vmatpush.bf16.msra.mxu0 %v2124
    %2198 = vmatpush.bf16.msra.mxu0 %v2123
    %2199 = vmatpush.bf16.msra.mxu0 %v2122
    %2200 = vmatpush.bf16.msra.mxu0 %v2121
    %2201 = vmatpush.bf16.msra.mxu0 %v2120
    %2202 = vmatpush.bf16.msra.mxu0 %v2119
    %2203 = vmatmul.bf16.gmra.mxu0 %v1905
    %v2204 = vpop.f32.mrf.mxu0
    %v2205 = vadd.f32 %v2191, %v2204
    %v2206 = vpop.f32.mrf.mxu0
    %v2207 = vadd.f32 %v2193, %v2206
    %2208 = vdwg.mxu0
    %2209 = vmatpush.bf16.msra.mxu0 %v2134
    %2210 = vmatpush.bf16.msra.mxu0 %v2133
    %2211 = vmatpush.bf16.msra.mxu0 %v2132
    %2212 = vmatpush.bf16.msra.mxu0 %v2131
    %2213 = vmatpush.bf16.msra.mxu0 %v2130
    %2214 = vmatpush.bf16.msra.mxu0 %v2129
    %2215 = vmatpush.bf16.msra.mxu0 %v2128
    %2216 = vmatpush.bf16.msra.mxu0 %v2127
    %2217 = vmatmul.bf16.gmra.mxu0 %v1906
    %v2218 = vpop.f32.mrf.mxu0
    %v2219 = vadd.f32 %v2205, %v2218
    %v2220 = vpop.f32.mrf.mxu0
    %v2221 = vadd.f32 %v2207, %v2220
    %2222 = vdwg.mxu0
    %2223 = vmax.xlane.f32.xlu0 %v2219
    %v2224 = vpop.xlane.xlu0 %2223
    %2225 = vmax.xlane.f32.xlu0 %v2221
    %v2226 = vpop.xlane.xlu0 %2225
    %v2227 = vsub.f32 %v2219, %v2224
    %v2228 = vsub.f32 %v2221, %v2226
    %v2229 = vmul.f32 %v2227, 1.442695
    %v2230 = vpow.pop %v2229
    %v2231 = vmul.f32 %v2228, 1.442695
    %v2232 = vpow.pop %v2231
    %2233 = vadd.xlane.f32.xlu0 %v2230
    %v2234 = vpop.xlane.xlu0 %2233
    %2235 = vadd.xlane.f32.xlu0 %v2232
    %v2236 = vpop.xlane.xlu0 %2235
    %v2237 = vrcp.pop %v2234
    %v2238 = vmul.f32 %v2234, %v2237
    %v2239 = vsub.f32 1.0, %v2238
    %v2240 = vmul.f32 %v2237, %v2239
    %v2241 = vadd.f32 %v2237, %v2240
    %vm2242 = vweird.f32 %v2234
    %vm2243 = vweird.f32 %v2237
    %vm2244 = vmor %vm2242, %vm2243
    %v2245 = vsel %vm2244, %v2237, %v2241
    %v2246 = vand.u32 2147483647, %v2234
    %vm2247 = vcmp.eq.f32.partialorder %v2246, 8.507059e+37
    %v2248 = vand.u32 %v2234, 2147483648
    %v2249 = vor.u32 1.1754944e-38, %v2248
    %v2250 = vsel %vm2247, %v2249, %v2245
    %v2251 = vrcp.pop %v2236
    %v2252 = vmul.f32 %v2236, %v2251
    %v2253 = vsub.f32 1.0, %v2252
    %v2254 = vmul.f32 %v2251, %v2253
    %v2255 = vadd.f32 %v2251, %v2254
    %vm2256 = vweird.f32 %v2236
    %vm2257 = vweird.f32 %v2251
    %vm2258 = vmor %vm2256, %vm2257
    %v2259 = vsel %vm2258, %v2251, %v2255
    %v2260 = vand.u32 2147483647, %v2236
    %vm2261 = vcmp.eq.f32.partialorder %v2260, 8.507059e+37
    %v2262 = vand.u32 %v2236, 2147483648
    %v2263 = vor.u32 1.1754944e-38, %v2262
    %v2264 = vsel %vm2261, %v2263, %v2259
    %v2265 = vmul.f32 %v2230, %v2250
    %v2266 = vmul.f32 %v2232, %v2264
    %2267 = vst [vmem:[%s9] sm:$0xff] %v2265
    %2268 = vst [vmem:[%s9 + $0x8] sm:$0xff] %v2266
    // Predicated region
    $region54: #{mlp_forward.1} parent=1 // pred_check
      _
    $region55: #{mlp_forward.1} parent=1 // pred_check_branch
      %2270 = sbr.rel (0) target = $region57
    $region56: #{mlp_forward.1} parent=1 // pred_region
      _
    $region57: #{mlp_forward.1} parent=1 // pred_fallthru
      _
    // Predicated region
    $region58: #{mlp_forward.1} parent=1 // pred_check
      _
    $region59: #{mlp_forward.1} parent=1 // pred_check_branch
      %2272 = sbr.rel (0) target = $region61
    $region60: #{mlp_forward.1} parent=1 // pred_region
      _
    $region61: #{mlp_forward.1} parent=1 // pred_fallthru
      _
    %2273 = vsyncpa [#allocation3], 1
    %2274 = vsyncpa [#allocation5], 1
    %2275 = vsyncpa [#allocation8], 1

</llo_original>
